<compile_context>
chip_gen: v7x
topology: tpu7x:2x2x1
jax: 0.10.0
libtpu: 0.0.40
codegen_flags: <defaults>
</compile_context>

<pallas_src>
import functools

import jax
import jax.numpy as jnp
import numpy as np
from jax import lax
from jax.experimental import pallas as pl
from jax.experimental.pallas import tpu as pltpu


def _vmem_limit_bytes():
    """Generation-aware scoped-VMEM limit (v7x has 64 MiB physical; v5e/v6e 128 MiB)."""
    cap = 128 * 1024 * 1024
    try:
        info = pltpu.get_tpu_info()
        cap = int(getattr(info, "vmem_capacity_bytes", cap) or cap)
    except Exception:
        pass
    return 40 * 1024 * 1024 if cap <= 64 * 1024 * 1024 else 100 * 1024 * 1024


# ------------------------------ kernels ------------------------------------


def _layernorm(y, gamma, beta, eps):
    mu = jnp.mean(y, axis=-1, keepdims=True)
    d = y - mu
    var = jnp.mean(d * d, axis=-1, keepdims=True)
    return d * lax.rsqrt(var + eps) * gamma + beta


def _attn_kernel(x_ref, bias_ref, wq_ref, bq_ref, wk_ref, bk_ref,
                 wv_ref, bv_ref, wo_ref, bo_ref, g_ref, b_ref,
                 o_ref, acc_ref, *, eps, mm_dtype):
    # One (batch, head) pair per program.  x tile (T,E) is constant across the
    # head axis (fetched once per batch); per-head weight slices & bias stream.
    h = pl.program_id(1)
    n_h = pl.num_programs(1)
    approx = jnp.dtype(mm_dtype) != jnp.dtype(jnp.float32)

    x = x_ref[0]                                   # (T, E) f32 — also the residual
    xm = x.astype(mm_dtype)

    # fused per-head q/k/v projections: (T,E)@(E,Dh), K=E keeps the MXU full.
    # 1/sqrt(Dh) is already folded into wq/bq.
    qh = jnp.dot(xm, wq_ref[0], preferred_element_type=jnp.float32) + bq_ref[0]
    kh = jnp.dot(xm, wk_ref[0], preferred_element_type=jnp.float32) + bk_ref[0]
    vh = jnp.dot(xm, wv_ref[0], preferred_element_type=jnp.float32) + bv_ref[0]

    # scores: contract last dims of q and k directly (no explicit k transpose).
    s = lax.dot_general(qh.astype(mm_dtype), kh.astype(mm_dtype),
                        (((1,), (1,)), ((), ())),
                        preferred_element_type=jnp.float32)
    s = s + bias_ref[0, 0].astype(jnp.float32)     # graph attention bias
    s = s - jnp.max(s, axis=-1, keepdims=True)     # f32 softmax
    p = jnp.exp(s)
    inv = pl.reciprocal(jnp.sum(p, axis=-1, keepdims=True), approx=approx)
    p = p * inv

    oh = jnp.dot(p.astype(mm_dtype), vh.astype(mm_dtype),
                 preferred_element_type=jnp.float32)          # (T, Dh)
    proj = jnp.dot(oh.astype(mm_dtype), wo_ref[0],
                   preferred_element_type=jnp.float32)        # (T, E) head slice of out_proj

    @pl.when(h == 0)
    def _():
        acc_ref[...] = jnp.zeros_like(acc_ref)

    acc_ref[...] += proj

    @pl.when(h == n_h - 1)
    def _():
        y = acc_ref[...] + bo_ref[...] + x         # out_proj bias + residual
        o_ref[0] = _layernorm(y, g_ref[...], b_ref[...], eps)   # self_attn_layer_norm


def _ffn_ln_kernel(x_ref, w1_ref, b1_ref, w2_ref, b2_ref, g_ref, b_ref, o_ref,
                   *, eps, mm_dtype):
    x = x_ref[...]                                 # (TM, E) f32 — also the residual
    h = jnp.dot(x.astype(mm_dtype), w1_ref[...],
                preferred_element_type=jnp.float32) + b1_ref[...]
    h = jnp.maximum(h, 0.0)                        # activation_fn = relu (default)
    y = jnp.dot(h.astype(mm_dtype), w2_ref[...],
                preferred_element_type=jnp.float32) + b2_ref[...]
    y = y + x                                      # residual add
    o_ref[...] = _layernorm(y, g_ref[...], b_ref[...], eps)  # final_layer_norm


# ------------------------------ wrapper -------------------------------------


def graphormer_layer_forward(params, x, attn_bias, *, num_heads, eps=1e-5,
                             mm_dtype=jnp.bfloat16, row_block=512):
    """x: (T, B, E) f32; attn_bias: (B, H, T, T) f32. Returns (T, B, E) f32."""
    T, B, E = x.shape
    H = num_heads
    Dh = E // H
    N = B * T
    F_dim = params["w1"].shape[1]
    scaling = Dh ** (-0.5)
    mm_dtype = jnp.dtype(mm_dtype)
    vmem_limit = _vmem_limit_bytes()

    # single host transpose in: (T,B,E)->(B,T,E) so per-batch tiles are lane-dense.
    # TODO(synk): address the (T,B,E) layout directly via (T,1,E) BlockSpecs to
    #             drop the two host transposes entirely.
    x_bt = jnp.transpose(x, (1, 0, 2))

    # Head-major weight layouts so the head grid axis selects weight slices via
    # BlockSpecs (no in-kernel dynamic lane slicing).  1/sqrt(Dh) folded into q.
    def to_heads_out(w):                 # (E, E) -> (H, E, Dh): split output features
        return jnp.transpose(w.reshape(E, H, Dh), (1, 0, 2))

    def to_heads_bias(b):                # (1, E) -> (H, 1, Dh)
        return jnp.transpose(b.reshape(1, H, Dh), (1, 0, 2))

    wq = to_heads_out(params["wq"] * scaling).astype(mm_dtype)
    wk = to_heads_out(params["wk"]).astype(mm_dtype)
    wv = to_heads_out(params["wv"]).astype(mm_dtype)
    bq = to_heads_bias(params["bq"] * scaling).astype(jnp.float32)
    bk = to_heads_bias(params["bk"]).astype(jnp.float32)
    bv = to_heads_bias(params["bv"]).astype(jnp.float32)
    wo = params["wo"].reshape(H, Dh, E).astype(mm_dtype)   # (H, Dh, E): input rows per head
    w1 = params["w1"].astype(mm_dtype)
    w2 = params["w2"].astype(mm_dtype)

    # Bias is the dominant HBM read of attention: stream it in the MXU dtype on
    # the fast path (halves DMA + VMEM), keep f32 on the exact-f32 path.
    if mm_dtype == jnp.dtype(jnp.float32):
        bias_in = attn_bias
    else:
        bias_in = attn_bias.astype(mm_dtype)

    bte_spec = pl.BlockSpec((1, T, E), lambda b, h: (b, 0, 0))
    head_w_spec = pl.BlockSpec((1, E, Dh), lambda b, h: (h, 0, 0))
    head_b_spec = pl.BlockSpec((1, 1, Dh), lambda b, h: (h, 0, 0))
    head_wo_spec = pl.BlockSpec((1, Dh, E), lambda b, h: (h, 0, 0))
    bias_spec = pl.BlockSpec((1, 1, T, T), lambda b, h: (b, h, 0, 0))
    vec_spec = pl.BlockSpec((1, E), lambda b, h: (0, 0))

    # ---- fused QKV + attention + out_proj + residual + self_attn_layer_norm ----
    x_after_attn = pl.pallas_call(
        functools.partial(_attn_kernel, eps=eps, mm_dtype=mm_dtype),
        out_shape=jax.ShapeDtypeStruct((B, T, E), jnp.float32),
        grid=(B, H),
        in_specs=[bte_spec, bias_spec,
                  head_w_spec, head_b_spec,
                  head_w_spec, head_b_spec,
                  head_w_spec, head_b_spec,
                  head_wo_spec, vec_spec, vec_spec, vec_spec],
        out_specs=bte_spec,
        scratch_shapes=[pltpu.VMEM((T, E), jnp.float32)],
        compiler_params=pltpu.CompilerParams(
            dimension_semantics=("parallel", "arbitrary"),
            vmem_limit_bytes=vmem_limit),
    )(x_bt, bias_in, wq, bq, wk, bk, wv, bv, wo, params["bo"],
      params["ln1_g"], params["ln1_b"])

    xa2d = x_after_attn.reshape(N, E)

    TM = int(min(row_block, N))
    grid_rows = pl.cdiv(N, TM)
    row_spec = pl.BlockSpec((TM, E), lambda i: (i, 0))

    def const_spec(shape):
        return pl.BlockSpec(shape, lambda i: (0,) * len(shape))

    # ---- FFN (fc1 -> relu -> fc2) + residual + final_layer_norm ----
    y2d = pl.pallas_call(
        functools.partial(_ffn_ln_kernel, eps=eps, mm_dtype=mm_dtype),
        out_shape=jax.ShapeDtypeStruct((N, E), jnp.float32),
        grid=(grid_rows,),
        in_specs=[row_spec,
                  const_spec((E, F_dim)), const_spec((1, F_dim)),
                  const_spec((F_dim, E)), const_spec((1, E)),
                  const_spec((1, E)), const_spec((1, E))],
        out_specs=row_spec,
        compiler_params=pltpu.CompilerParams(
            dimension_semantics=("parallel",),
            vmem_limit_bytes=vmem_limit),
    )(xa2d, w1, params["b1"], w2, params["b2"],
      params["ln2_g"], params["ln2_b"])

    # single host transpose out: (B, T, E) -> (T, B, E)
    return jnp.transpose(y2d.reshape(B, T, E), (1, 0, 2))


# ------------------------------ pure-JAX reference ---------------------------


def reference_forward(params, x, attn_bias, *, num_heads, eps=1e-5):
    T, B, E = x.shape
    H = num_heads
    Dh = E // H
    scaling = Dh ** (-0.5)

    def lin(a, w, b):
        return a @ w + b[0]

    def ln(a, g, b):
        mu = jnp.mean(a, axis=-1, keepdims=True)
        var = jnp.mean((a - mu) ** 2, axis=-1, keepdims=True)
        return (a - mu) / jnp.sqrt(var + eps) * g[0] + b[0]

    residual = x
    q = lin(x, params["wq"], params["bq"]) * scaling
    k = lin(x, params["wk"], params["bk"])
    v = lin(x, params["wv"], params["bv"])
    qh = q.reshape(T, B * H, Dh).transpose(1, 0, 2)
    kh = k.reshape(T, B * H, Dh).transpose(1, 0, 2)
    vh = v.reshape(T, B * H, Dh).transpose(1, 0, 2)
    s = jnp.einsum("btd,bsd->bts", qh, kh) + attn_bias.reshape(B * H, T, T)
    p = jax.nn.softmax(s, axis=-1)
    o = jnp.einsum("bts,bsd->btd", p, vh)
    o = o.transpose(1, 0, 2).reshape(T, B, E)
    o = lin(o, params["wo"], params["bo"])
    xa = ln(residual + o, params["ln1_g"], params["ln1_b"])
    h = jnp.maximum(lin(xa, params["w1"], params["b1"]), 0.0)
    y = lin(h, params["w2"], params["b2"])
    return ln(xa + y, params["ln2_g"], params["ln2_b"])


# ------------------------------ main -----------------------------------------


if __name__ == "__main__":
    T, B, E, H, FFN = 8, 2, 32, 4, 64

    key = jax.random.PRNGKey(0)
    ks = jax.random.split(key, 12)

    def w(k, shape, scale=0.05):
        return (scale * jax.random.normal(k, shape)).astype(jnp.float32)

    params = {
        "wq": w(ks[0], (E, E)), "bq": w(ks[1], (1, E)),
        "wk": w(ks[2], (E, E)), "bk": w(ks[3], (1, E)),
        "wv": w(ks[4], (E, E)), "bv": w(ks[5], (1, E)),
        "wo": w(ks[6], (E, E)), "bo": jnp.zeros((1, E), jnp.float32),
        "w1": w(ks[7], (E, FFN)), "b1": w(ks[8], (1, FFN)),
        "w2": w(ks[9], (FFN, E)), "b2": w(ks[10], (1, E)),
        "ln1_g": jnp.ones((1, E), jnp.float32), "ln1_b": jnp.zeros((1, E), jnp.float32),
        "ln2_g": jnp.ones((1, E), jnp.float32), "ln2_b": jnp.zeros((1, E), jnp.float32),
    }

    kx, kb = jax.random.split(ks[11])
    x = jax.random.normal(kx, (T, B, E), dtype=jnp.float32)
    attn_bias = 0.1 * jax.random.normal(kb, (B, H, T, T), dtype=jnp.float32)

    ref = reference_forward(params, x, attn_bias, num_heads=H)

    # exact f32 path: tight tolerance against the f32 reference
    out_f32 = graphormer_layer_forward(params, x, attn_bias, num_heads=H,
                                       mm_dtype=jnp.float32)
    out_f32 = jax.block_until_ready(out_f32)
    np.testing.assert_allclose(np.asarray(out_f32), np.asarray(ref),
                               rtol=1e-4, atol=1e-4)

    # fast bf16-MXU path (f32 accumulation / softmax / LayerNorm, bf16 bias stream)
    out_bf16 = graphormer_layer_forward(params, x, attn_bias, num_heads=H,
                                        mm_dtype=jnp.bfloat16)
    out_bf16 = jax.block_until_ready(out_bf16)
    np.testing.assert_allclose(np.asarray(out_bf16), np.asarray(ref),
                               rtol=3e-2, atol=3e-2)

    print("KERNEL_OK")
</pallas_src>

<mosaic_0001>
module attributes {stable_mosaic.version = 11 : i64} {
  func.func @_attn_kernel(%arg0: i32, %arg1: i32, %arg2: memref<1x8x32xf32, #tpu.memory_space<vmem>>, %arg3: memref<1x1x8x8xf32, #tpu.memory_space<vmem>>, %arg4: memref<1x32x8xf32, #tpu.memory_space<vmem>>, %arg5: memref<1x1x8xf32, #tpu.memory_space<vmem>>, %arg6: memref<1x32x8xf32, #tpu.memory_space<vmem>>, %arg7: memref<1x1x8xf32, #tpu.memory_space<vmem>>, %arg8: memref<1x32x8xf32, #tpu.memory_space<vmem>>, %arg9: memref<1x1x8xf32, #tpu.memory_space<vmem>>, %arg10: memref<1x8x32xf32, #tpu.memory_space<vmem>>, %arg11: memref<1x32xf32, #tpu.memory_space<vmem>>, %arg12: memref<1x32xf32, #tpu.memory_space<vmem>>, %arg13: memref<1x32xf32, #tpu.memory_space<vmem>>, %arg14: memref<1x8x32xf32, #tpu.memory_space<vmem>>, %arg15: memref<8x32xf32, #tpu.memory_space<vmem>>) attributes {dimension_semantics = [#tpu.dimension_semantics<parallel>, #tpu.dimension_semantics<arbitrary>], iteration_bounds = array<i64: 2, 4>, scalar_prefetch = 0 : i64, scratch_operands = 1 : i64, tpu.core_type = #tpu.core_type<tc>, window_params = [{transform_indices = @transform_0, window_bounds = array<i64: 1, 8, 32>}, {transform_indices = @transform_1, window_bounds = array<i64: 1, 1, 8, 8>}, {transform_indices = @transform_2, window_bounds = array<i64: 1, 32, 8>}, {transform_indices = @transform_3, window_bounds = array<i64: 1, 1, 8>}, {transform_indices = @transform_4, window_bounds = array<i64: 1, 32, 8>}, {transform_indices = @transform_5, window_bounds = array<i64: 1, 1, 8>}, {transform_indices = @transform_6, window_bounds = array<i64: 1, 32, 8>}, {transform_indices = @transform_7, window_bounds = array<i64: 1, 1, 8>}, {transform_indices = @transform_8, window_bounds = array<i64: 1, 8, 32>}, {pipeline_mode = #tpu.pipeline_mode<synchronous>, transform_indices = @transform_9, window_bounds = array<i64: 1, 32>}, {pipeline_mode = #tpu.pipeline_mode<synchronous>, transform_indices = @transform_10, window_bounds = array<i64: 1, 32>}, {pipeline_mode = #tpu.pipeline_mode<synchronous>, transform_indices = @transform_11, window_bounds = array<i64: 1, 32>}, {transform_indices = @transform_12, window_bounds = array<i64: 1, 8, 32>}]} {
    %c0 = arith.constant 0 : index
    %c0_0 = arith.constant 0 : index
    %c0_1 = arith.constant 0 : index
    %0 = vector.load %arg2[%c0, %c0_0, %c0_1] : memref<1x8x32xf32, #tpu.memory_space<vmem>>, vector<1x8x32xf32>
    %1 = vector.shape_cast %0 : vector<1x8x32xf32> to vector<8x32xf32>
    %c0_2 = arith.constant 0 : index
    %c0_3 = arith.constant 0 : index
    %c0_4 = arith.constant 0 : index
    %2 = vector.load %arg4[%c0_2, %c0_3, %c0_4] : memref<1x32x8xf32, #tpu.memory_space<vmem>>, vector<1x32x8xf32>
    %3 = vector.shape_cast %2 : vector<1x32x8xf32> to vector<32x8xf32>
    %cst = arith.constant dense<0.000000e+00> : vector<8x8xf32>
    %4 = tpu.matmul %1, %3, %cst {dimension_numbers = #tpu.dot_dimension_numbers<[1], [0], [0], [1], [0, 0, 1, 1], [], []>} : vector<8x32xf32>, vector<32x8xf32>, vector<8x8xf32> -> vector<8x8xf32>
    %c0_5 = arith.constant 0 : index
    %c0_6 = arith.constant 0 : index
    %c0_7 = arith.constant 0 : index
    %5 = vector.load %arg5[%c0_5, %c0_6, %c0_7] : memref<1x1x8xf32, #tpu.memory_space<vmem>>, vector<1x1x8xf32>
    %6 = vector.shape_cast %5 : vector<1x1x8xf32> to vector<1x8xf32>
    %7 = vector.broadcast %6 : vector<1x8xf32> to vector<8x8xf32>
    %8 = arith.addf %4, %7 : vector<8x8xf32>
    %c0_8 = arith.constant 0 : index
    %c0_9 = arith.constant 0 : index
    %c0_10 = arith.constant 0 : index
    %9 = vector.load %arg6[%c0_8, %c0_9, %c0_10] : memref<1x32x8xf32, #tpu.memory_space<vmem>>, vector<1x32x8xf32>
    %10 = vector.shape_cast %9 : vector<1x32x8xf32> to vector<32x8xf32>
    %cst_11 = arith.constant dense<0.000000e+00> : vector<8x8xf32>
    %11 = tpu.matmul %1, %10, %cst_11 {dimension_numbers = #tpu.dot_dimension_numbers<[1], [0], [0], [1], [0, 0, 1, 1], [], []>} : vector<8x32xf32>, vector<32x8xf32>, vector<8x8xf32> -> vector<8x8xf32>
    %c0_12 = arith.constant 0 : index
    %c0_13 = arith.constant 0 : index
    %c0_14 = arith.constant 0 : index
    %12 = vector.load %arg7[%c0_12, %c0_13, %c0_14] : memref<1x1x8xf32, #tpu.memory_space<vmem>>, vector<1x1x8xf32>
    %13 = vector.shape_cast %12 : vector<1x1x8xf32> to vector<1x8xf32>
    %14 = vector.broadcast %13 : vector<1x8xf32> to vector<8x8xf32>
    %15 = arith.addf %11, %14 : vector<8x8xf32>
    %c0_15 = arith.constant 0 : index
    %c0_16 = arith.constant 0 : index
    %c0_17 = arith.constant 0 : index
    %16 = vector.load %arg8[%c0_15, %c0_16, %c0_17] : memref<1x32x8xf32, #tpu.memory_space<vmem>>, vector<1x32x8xf32>
    %17 = vector.shape_cast %16 : vector<1x32x8xf32> to vector<32x8xf32>
    %cst_18 = arith.constant dense<0.000000e+00> : vector<8x8xf32>
    %18 = tpu.matmul %1, %17, %cst_18 {dimension_numbers = #tpu.dot_dimension_numbers<[1], [0], [0], [1], [0, 0, 1, 1], [], []>} : vector<8x32xf32>, vector<32x8xf32>, vector<8x8xf32> -> vector<8x8xf32>
    %c0_19 = arith.constant 0 : index
    %c0_20 = arith.constant 0 : index
    %c0_21 = arith.constant 0 : index
    %19 = vector.load %arg9[%c0_19, %c0_20, %c0_21] : memref<1x1x8xf32, #tpu.memory_space<vmem>>, vector<1x1x8xf32>
    %20 = vector.shape_cast %19 : vector<1x1x8xf32> to vector<1x8xf32>
    %21 = vector.broadcast %20 : vector<1x8xf32> to vector<8x8xf32>
    %22 = arith.addf %18, %21 : vector<8x8xf32>
    %cst_22 = arith.constant dense<0.000000e+00> : vector<8x8xf32>
    %23 = tpu.matmul %8, %15, %cst_22 {dimension_numbers = #tpu.dot_dimension_numbers<[1], [1], [0], [0], [0, 0, 1, 0], [], []>} : vector<8x8xf32>, vector<8x8xf32>, vector<8x8xf32> -> vector<8x8xf32>
    %c0_23 = arith.constant 0 : index
    %c0_24 = arith.constant 0 : index
    %c0_25 = arith.constant 0 : index
    %c0_26 = arith.constant 0 : index
    %24 = vector.load %arg3[%c0_23, %c0_24, %c0_25, %c0_26] : memref<1x1x8x8xf32, #tpu.memory_space<vmem>>, vector<1x1x8x8xf32>
    %25 = vector.shape_cast %24 : vector<1x1x8x8xf32> to vector<8x8xf32>
    %26 = arith.addf %23, %25 : vector<8x8xf32>
    %cst_27 = arith.constant dense<0xFF800000> : vector<8xf32>
    %27 = vector.multi_reduction <maximumf>, %26, %cst_27 [1] : vector<8x8xf32> to vector<8xf32>
    %28 = vector.shape_cast %27 : vector<8xf32> to vector<8x1xf32>
    %29 = vector.broadcast %28 : vector<8x1xf32> to vector<8x8xf32>
    %30 = arith.subf %26, %29 : vector<8x8xf32>
    %31 = math.exp %30 : vector<8x8xf32>
    %cst_28 = arith.constant dense<0.000000e+00> : vector<8xf32>
    %32 = vector.multi_reduction <add>, %31, %cst_28 [1] : vector<8x8xf32> to vector<8xf32>
    %33 = vector.shape_cast %32 : vector<8xf32> to vector<8x1xf32>
    %34 = tpu.reciprocal %33 : vector<8x1xf32> -> vector<8x1xf32>
    %35 = vector.broadcast %34 : vector<8x1xf32> to vector<8x8xf32>
    %36 = arith.mulf %31, %35 : vector<8x8xf32>
    %cst_29 = arith.constant dense<0.000000e+00> : vector<8x8xf32>
    %37 = tpu.matmul %36, %22, %cst_29 {dimension_numbers = #tpu.dot_dimension_numbers<[1], [0], [0], [1], [0, 0, 1, 1], [], []>} : vector<8x8xf32>, vector<8x8xf32>, vector<8x8xf32> -> vector<8x8xf32>
    %c0_30 = arith.constant 0 : index
    %c0_31 = arith.constant 0 : index
    %c0_32 = arith.constant 0 : index
    %38 = vector.load %arg10[%c0_30, %c0_31, %c0_32] : memref<1x8x32xf32, #tpu.memory_space<vmem>>, vector<1x8x32xf32>
    %39 = vector.shape_cast %38 : vector<1x8x32xf32> to vector<8x32xf32>
    %cst_33 = arith.constant dense<0.000000e+00> : vector<8x32xf32>
    %40 = tpu.matmul %37, %39, %cst_33 {dimension_numbers = #tpu.dot_dimension_numbers<[1], [0], [0], [1], [0, 0, 1, 1], [], []>} : vector<8x8xf32>, vector<8x32xf32>, vector<8x32xf32> -> vector<8x32xf32>
    %c0_i32 = arith.constant 0 : i32
    %41 = arith.cmpi eq, %arg1, %c0_i32 : i32
    %42 = arith.extui %41 : i1 to i32
    %c0_i32_34 = arith.constant 0 : i32
    %43 = arith.cmpi ne, %42, %c0_i32_34 : i32
    scf.if %43 {
      %cst_40 = arith.constant 0.000000e+00 : f32
      %50 = vector.broadcast %cst_40 : f32 to vector<8x32xf32>
      %c0_41 = arith.constant 0 : index
      %c0_42 = arith.constant 0 : index
      %51 = vector.load %arg15[%c0_41, %c0_42] : memref<8x32xf32, #tpu.memory_space<vmem>>, vector<8x32xf32>
      tpu.vector_store %arg15[%c0_41, %c0_42], %50 {strides = array<i32>} : memref<8x32xf32, #tpu.memory_space<vmem>>, vector<8x32xf32>,
    } else {
    }
    %c0_35 = arith.constant 0 : index
    %c0_36 = arith.constant 0 : index
    %44 = vector.load %arg15[%c0_35, %c0_36] : memref<8x32xf32, #tpu.memory_space<vmem>>, vector<8x32xf32>
    %45 = arith.addf %44, %40 : vector<8x32xf32>
    %c0_37 = arith.constant 0 : index
    %c0_38 = arith.constant 0 : index
    %46 = vector.load %arg15[%c0_37, %c0_38] : memref<8x32xf32, #tpu.memory_space<vmem>>, vector<8x32xf32>
    tpu.vector_store %arg15[%c0_37, %c0_38], %45 {strides = array<i32>} : memref<8x32xf32, #tpu.memory_space<vmem>>, vector<8x32xf32>,
    %c3_i32 = arith.constant 3 : i32
    %47 = arith.cmpi eq, %arg1, %c3_i32 : i32
    %48 = arith.extui %47 : i1 to i32
    %c0_i32_39 = arith.constant 0 : i32
    %49 = arith.cmpi ne, %48, %c0_i32_39 : i32
    scf.if %49 {
      %c0_40 = arith.constant 0 : index
      %c0_41 = arith.constant 0 : index
      %50 = vector.load %arg15[%c0_40, %c0_41] : memref<8x32xf32, #tpu.memory_space<vmem>>, vector<8x32xf32>
      %c0_42 = arith.constant 0 : index
      %c0_43 = arith.constant 0 : index
      %51 = vector.load %arg11[%c0_42, %c0_43] : memref<1x32xf32, #tpu.memory_space<vmem>>, vector<1x32xf32>
      %52 = vector.broadcast %51 : vector<1x32xf32> to vector<8x32xf32>
      %53 = arith.addf %50, %52 : vector<8x32xf32>
      %54 = arith.addf %53, %1 : vector<8x32xf32>
      %c0_44 = arith.constant 0 : index
      %c0_45 = arith.constant 0 : index
      %55 = vector.load %arg12[%c0_44, %c0_45] : memref<1x32xf32, #tpu.memory_space<vmem>>, vector<1x32xf32>
      %c0_46 = arith.constant 0 : index
      %c0_47 = arith.constant 0 : index
      %56 = vector.load %arg13[%c0_46, %c0_47] : memref<1x32xf32, #tpu.memory_space<vmem>>, vector<1x32xf32>
      %cst_48 = arith.constant dense<0.000000e+00> : vector<8xf32>
      %57 = vector.multi_reduction <add>, %54, %cst_48 [1] : vector<8x32xf32> to vector<8xf32>
      %58 = vector.shape_cast %57 : vector<8xf32> to vector<8x1xf32>
      %cst_49 = arith.constant 3.200000e+01 : f32
      %59 = vector.broadcast %cst_49 : f32 to vector<8x1xf32>
      %60 = arith.divf %58, %59 : vector<8x1xf32>
      %61 = vector.broadcast %60 : vector<8x1xf32> to vector<8x32xf32>
      %62 = arith.subf %54, %61 : vector<8x32xf32>
      %63 = arith.mulf %62, %62 : vector<8x32xf32>
      %cst_50 = arith.constant dense<0.000000e+00> : vector<8xf32>
      %64 = vector.multi_reduction <add>, %63, %cst_50 [1] : vector<8x32xf32> to vector<8xf32>
      %65 = vector.shape_cast %64 : vector<8xf32> to vector<8x1xf32>
      %cst_51 = arith.constant 3.200000e+01 : f32
      %66 = vector.broadcast %cst_51 : f32 to vector<8x1xf32>
      %67 = arith.divf %65, %66 : vector<8x1xf32>
      %cst_52 = arith.constant 9.99999974E-6 : f32
      %68 = vector.broadcast %cst_52 : f32 to vector<8x1xf32>
      %69 = arith.addf %67, %68 : vector<8x1xf32>
      %70 = math.rsqrt %69 : vector<8x1xf32>
      %71 = vector.broadcast %70 : vector<8x1xf32> to vector<8x32xf32>
      %72 = arith.mulf %62, %71 : vector<8x32xf32>
      %73 = vector.broadcast %55 : vector<1x32xf32> to vector<8x32xf32>
      %74 = arith.mulf %72, %73 : vector<8x32xf32>
      %75 = vector.broadcast %56 : vector<1x32xf32> to vector<8x32xf32>
      %76 = arith.addf %74, %75 : vector<8x32xf32>
      %c0_53 = arith.constant 0 : index
      %c0_54 = arith.constant 0 : index
      %c0_55 = arith.constant 0 : index
      %77 = vector.load %arg14[%c0_53, %c0_54, %c0_55] : memref<1x8x32xf32, #tpu.memory_space<vmem>>, vector<1x8x32xf32>
      %78 = vector.shape_cast %77 : vector<1x8x32xf32> to vector<8x32xf32>
      %79 = vector.shape_cast %76 : vector<8x32xf32> to vector<1x8x32xf32>
      tpu.vector_store %arg14[%c0_53, %c0_54, %c0_55], %79 {strides = array<i32>} : memref<1x8x32xf32, #tpu.memory_space<vmem>>, vector<1x8x32xf32>,
    } else {
    }
    return
  }
  func.func @transform_0(%arg0: i32, %arg1: i32) -> (i32, i32, i32) {
    %c0_i32 = arith.constant 0 : i32
    %c0_i32_0 = arith.constant 0 : i32
    %c0_i32_1 = arith.constant 0 : i32
    return %arg0, %c0_i32, %c0_i32_0 : i32, i32, i32
  }
  func.func @transform_1(%arg0: i32, %arg1: i32) -> (i32, i32, i32, i32) {
    %c0_i32 = arith.constant 0 : i32
    %c0_i32_0 = arith.constant 0 : i32
    %c0_i32_1 = arith.constant 0 : i32
    return %arg0, %arg1, %c0_i32, %c0_i32_0 : i32, i32, i32, i32
  }
  func.func @transform_2(%arg0: i32, %arg1: i32) -> (i32, i32, i32) {
    %c0_i32 = arith.constant 0 : i32
    %c0_i32_0 = arith.constant 0 : i32
    %c0_i32_1 = arith.constant 0 : i32
    return %arg1, %c0_i32, %c0_i32_0 : i32, i32, i32
  }
  func.func @transform_3(%arg0: i32, %arg1: i32) -> (i32, i32, i32) {
    %c0_i32 = arith.constant 0 : i32
    %c0_i32_0 = arith.constant 0 : i32
    %c0_i32_1 = arith.constant 0 : i32
    return %arg1, %c0_i32, %c0_i32_0 : i32, i32, i32
  }
  func.func @transform_4(%arg0: i32, %arg1: i32) -> (i32, i32, i32) {
    %c0_i32 = arith.constant 0 : i32
    %c0_i32_0 = arith.constant 0 : i32
    %c0_i32_1 = arith.constant 0 : i32
    return %arg1, %c0_i32, %c0_i32_0 : i32, i32, i32
  }
  func.func @transform_5(%arg0: i32, %arg1: i32) -> (i32, i32, i32) {
    %c0_i32 = arith.constant 0 : i32
    %c0_i32_0 = arith.constant 0 : i32
    %c0_i32_1 = arith.constant 0 : i32
    return %arg1, %c0_i32, %c0_i32_0 : i32, i32, i32
  }
  func.func @transform_6(%arg0: i32, %arg1: i32) -> (i32, i32, i32) {
    %c0_i32 = arith.constant 0 : i32
    %c0_i32_0 = arith.constant 0 : i32
    %c0_i32_1 = arith.constant 0 : i32
    return %arg1, %c0_i32, %c0_i32_0 : i32, i32, i32
  }
  func.func @transform_7(%arg0: i32, %arg1: i32) -> (i32, i32, i32) {
    %c0_i32 = arith.constant 0 : i32
    %c0_i32_0 = arith.constant 0 : i32
    %c0_i32_1 = arith.constant 0 : i32
    return %arg1, %c0_i32, %c0_i32_0 : i32, i32, i32
  }
  func.func @transform_8(%arg0: i32, %arg1: i32) -> (i32, i32, i32) {
    %c0_i32 = arith.constant 0 : i32
    %c0_i32_0 = arith.constant 0 : i32
    %c0_i32_1 = arith.constant 0 : i32
    return %arg1, %c0_i32, %c0_i32_0 : i32, i32, i32
  }
  func.func @transform_9(%arg0: i32, %arg1: i32) -> (i32, i32) {
    %c0_i32 = arith.constant 0 : i32
    %c0_i32_0 = arith.constant 0 : i32
    %c0_i32_1 = arith.constant 0 : i32
    return %c0_i32, %c0_i32_0 : i32, i32
  }
  func.func @transform_10(%arg0: i32, %arg1: i32) -> (i32, i32) {
    %c0_i32 = arith.constant 0 : i32
    %c0_i32_0 = arith.constant 0 : i32
    %c0_i32_1 = arith.constant 0 : i32
    return %c0_i32, %c0_i32_0 : i32, i32
  }
  func.func @transform_11(%arg0: i32, %arg1: i32) -> (i32, i32) {
    %c0_i32 = arith.constant 0 : i32
    %c0_i32_0 = arith.constant 0 : i32
    %c0_i32_1 = arith.constant 0 : i32
    return %c0_i32, %c0_i32_0 : i32, i32
  }
  func.func @transform_12(%arg0: i32, %arg1: i32) -> (i32, i32, i32) {
    %c0_i32 = arith.constant 0 : i32
    %c0_i32_0 = arith.constant 0 : i32
    %c0_i32_1 = arith.constant 0 : i32
    return %arg0, %c0_i32, %c0_i32_0 : i32, i32, i32
  }
}

</mosaic_0001>

<llo_original>
// kernel: tpu_custom_call.1
$region0: #{tpu_custom_call.1}
  #allocation0 [shape = 'u32[]', space=smem, size = 0x4, offset = 0x4, fixed_abs, tag = 'smem constant byte address 0x4 - core index']
  #allocation1 [shape = 'u32[144,128]{1,0:T(1,128)}', space=vmem, size = 0x12000, scoped, tag = 'internal scratch']
  #allocation2 [shape = 'f32[8,32]{1,0:T(8,128)}', space=vmem, size = 0x1000, scoped, tag = 'scratch operand']
  %s0 = inlined_call_operand.hbm [shape: f32[2,8,32], index: 0, kind: input, shape index: {}]
  %s1 = inlined_call_operand.hbm [shape: f32[2,4,8,8], index: 1, kind: input, shape index: {}]
  %s2 = inlined_call_operand.hbm [shape: f32[4,32,8], index: 2, kind: input, shape index: {}]
  %s3 = inlined_call_operand.hbm [shape: f32[4,1,8], index: 3, kind: input, shape index: {}]
  %s4 = inlined_call_operand.hbm [shape: f32[4,32,8], index: 4, kind: input, shape index: {}]
  %s5 = inlined_call_operand.hbm [shape: f32[4,1,8], index: 5, kind: input, shape index: {}]
  %s6 = inlined_call_operand.hbm [shape: f32[4,32,8], index: 6, kind: input, shape index: {}]
  %s7 = inlined_call_operand.hbm [shape: f32[4,1,8], index: 7, kind: input, shape index: {}]
  %s8 = inlined_call_operand.hbm [shape: f32[4,8,32], index: 8, kind: input, shape index: {}]
  %s9 = inlined_call_operand.hbm [shape: f32[1,32], index: 9, kind: input, shape index: {}]
  %s10 = inlined_call_operand.hbm [shape: f32[1,32], index: 10, kind: input, shape index: {}]
  %s11 = inlined_call_operand.hbm [shape: f32[1,32], index: 11, kind: input, shape index: {}]
  %s12 = inlined_call_operand.hbm [shape: f32[2,8,32], index: 12, kind: output, shape index: {}]
  %s13 = sld [smem:[#allocation0]]
  $region137: #{tpu_custom_call.1} parent=0
    _
  %s15 = ssub.s32 1, %s13
  %s16 = scalar_select 0, %s15, %s13
  $region1: #{tpu_custom_call.1} parent=0
    #allocation3 [shape = 'u8[8192]{0}', space=vmem, size = 0x2000, scoped, tag = 'input window, operand 0']
    #allocation4 [shape = 's32[2]{0}', space=sflag, size = 0x8, scoped, tag = 'scoped memory for tpu_custom_call.1']
    #allocation5 [shape = 's32[2]{0}', space=sflag, size = 0x8, scoped, tag = 'scoped memory for tpu_custom_call.1']
    #allocation6 [shape = 'u8[8192]{0}', space=vmem, size = 0x2000, scoped, tag = 'input window, operand 1']
    #allocation7 [shape = 's32[2]{0}', space=sflag, size = 0x8, scoped, tag = 'scoped memory for tpu_custom_call.1']
    #allocation8 [shape = 'u8[32768]{0}', space=vmem, size = 0x8000, scoped, tag = 'input window, operand 2']
    #allocation9 [shape = 'u8[1024]{0}', space=vmem, size = 0x400, scoped, tag = 'input window, operand 3']
    #allocation10 [shape = 's32[2]{0}', space=sflag, size = 0x8, scoped, tag = 'scoped memory for tpu_custom_call.1']
    #allocation11 [shape = 'u8[32768]{0}', space=vmem, size = 0x8000, scoped, tag = 'input window, operand 4']
    #allocation12 [shape = 'u8[1024]{0}', space=vmem, size = 0x400, scoped, tag = 'input window, operand 5']
    #allocation13 [shape = 's32[2]{0}', space=sflag, size = 0x8, scoped, tag = 'scoped memory for tpu_custom_call.1']
    #allocation14 [shape = 'u8[32768]{0}', space=vmem, size = 0x8000, scoped, tag = 'input window, operand 6']
    #allocation15 [shape = 'u8[1024]{0}', space=vmem, size = 0x400, scoped, tag = 'input window, operand 7']
    #allocation16 [shape = 's32[2]{0}', space=sflag, size = 0x8, scoped, tag = 'scoped memory for tpu_custom_call.1']
    #allocation17 [shape = 'u8[8192]{0}', space=vmem, size = 0x2000, scoped, tag = 'input window, operand 8']
    #allocation18 [shape = 'u8[512]{0}', space=vmem, size = 0x400, scoped, tag = 'input window, operand 9, single buffered']
    #allocation19 [shape = 's32[1]{0}', space=sflag, size = 0x4, scoped, tag = 'scoped memory for tpu_custom_call.1']
    #allocation20 [shape = 'u8[512]{0}', space=vmem, size = 0x400, scoped, tag = 'input window, operand 10, single buffered']
    #allocation21 [shape = 'u8[512]{0}', space=vmem, size = 0x400, scoped, tag = 'input window, operand 11, single buffered']
    #allocation22 [shape = 's32[1]{0}', space=sflag, size = 0x4, scoped, tag = 'scoped memory for tpu_custom_call.1']
    #allocation23 [shape = 'u8[8192]{0}', space=vmem, size = 0x2000, scoped, tag = 'output window, operand 0']
    %17 = vsyncpa [#allocation4], 0
    %s18 = scalar_lea.sflag [#allocation4], 1
    %19 = vsyncpa %s18, 0
    %20 = vsyncpa [#allocation7], 0
    %s21 = scalar_lea.sflag [#allocation7], 1
    %22 = vsyncpa %s21, 0
    %23 = vsyncpa [#allocation10], 0
    %s24 = scalar_lea.sflag [#allocation10], 1
    %25 = vsyncpa %s24, 0
    %26 = vsyncpa [#allocation13], 0
    %s27 = scalar_lea.sflag [#allocation13], 1
    %28 = vsyncpa %s27, 0
    %29 = vsyncpa [#allocation16], 0
    %s30 = scalar_lea.sflag [#allocation16], 1
    %31 = vsyncpa %s30, 0
    %32 = vsyncpa [#allocation19], 0
    %33 = vsyncpa [#allocation22], 0
    %34 = vsyncpa [#allocation5], 0
    %s35 = scalar_lea.sflag [#allocation5], 1
    %36 = vsyncpa %s35, 0
    loop: start=0, step=1, limit=10
    $region2: #{tpu_custom_call.1} parent=1 // loop_pre_header
      _
    $region3: #{tpu_custom_call.1} parent=1 // loop_header
      %s38 = sphi 0, %s42
      %p39 = scmp.ge.s32.totalorder %s38, 10
      %s45 = sphi 0, %s57
      %s46 = sphi 0, %s53
      %s47 = sphi 0, %s45
      %s48 = sphi 0, %s46
      %s49 = sphi 0, %s47
      %s50 = sphi 0, %s48
      %s60 = sphi 0, %s62
      %s63 = sphi 0, %s60
      %s64 = sphi 0, %s63
      %s80 = sphi 0, %s64
      %s88 = sphi 0, %s90
      %s91 = sphi 0, %s88
      %s92 = sphi 0, %s91
      %s108 = sphi 0, %s92
      %s114 = sphi 0, %s116
      %s117 = sphi 0, %s114
      %s118 = sphi 0, %s117
      %s134 = sphi 0, %s118
      %s140 = sphi 0, %s142
      %s143 = sphi 0, %s140
      %s144 = sphi 0, %s143
      %s160 = sphi 0, %s144
      %s166 = sphi 0, %s168
      %s169 = sphi 0, %s166
      %s170 = sphi 0, %s169
      %s186 = sphi 0, %s170
      %s192 = sphi 0, %s194
      %s195 = sphi 0, %s192
      %s196 = sphi 0, %s195
      %s212 = sphi 0, %s196
      %s218 = sphi 0, %s220
      %s221 = sphi 0, %s218
      %s222 = sphi 0, %s221
      %s238 = sphi 0, %s222
      %s244 = sphi 0, %s246
      %s247 = sphi 0, %s244
      %s248 = sphi 0, %s247
      %s264 = sphi 0, %s248
      %s270 = sphi 0, %s272
      %s273 = sphi 0, %s270
      %s274 = sphi 0, %s273
      %s290 = sphi 0, %s274
      %s294 = sphi 0, %s294
      %s296 = sphi 0, %s294
      %s297 = sphi 0, %s296
      %s311 = sphi 0, %s297
      %s315 = sphi 0, %s315
      %s317 = sphi 0, %s315
      %s318 = sphi 0, %s317
      %s332 = sphi 0, %s318
      %s336 = sphi 0, %s336
      %s338 = sphi 0, %s336
      %s339 = sphi 0, %s338
      %s353 = sphi 0, %s339
      %s359 = sphi 0, %s361
      %s362 = sphi 0, %s359
      %s363 = sphi 0, %s362
      %s379 = sphi 0, %s363
    $region4: #{tpu_custom_call.1} parent=1 // loop_header_branch
      %41 = sbr.rel (%p39) target = $region8
    $region5: #{tpu_custom_call.1} parent=1 // loop_body
      %s43 = ssub.s32 %s38, 1
      %s44 = ssub.s32 %s38, 2
      %s51 = sadd.s32 1, %s46
      %p52 = scmp.ge.s32.totalorder %s51, 4
      %s53 = scalar_select %p52, 0, %s51
      %s54 = sadd.s32 1, %s45
      %s55 = scalar_select %p52, %s54, %s45
      %p56 = scmp.ge.s32.totalorder %s55, 2
      %s57 = scalar_select %p56, 0, %s55
      %s58 = ssub.s32 %s45, %s57
      %p59 = scmp.eq.s32.totalorder %s58, 0
      %s61 = sadd.s32 %s60, 1
      %s62 = scalar_select %p59, %s60, %s61
      %p65 = pneg %p59
      %p66 = scmp.eq.s32.totalorder %s38, 7
      %p67 = por %p65, %p66
      %p68 = scmp.ne.s32.totalorder %s60, %s63
      %p69 = scmp.eq.s32.totalorder %s38, 0
      %p70 = por %p68, %p69
      %p71 = scmp.ne.s32.totalorder %s60, %s63
      %p72 = scmp.eq.s32.totalorder %s43, 7
      %p73 = por %p71, %p72
      %p74 = scmp.ne.s32.totalorder %s63, %s64
      %p75 = scmp.eq.s32.totalorder %s43, 0
      %p76 = por %p74, %p75
      %p77 = scmp.ne.s32.totalorder %s63, %s64
      %p78 = scmp.eq.s32.totalorder %s44, 7
      %p79 = por %p77, %p78
      %p81 = scmp.ne.s32.totalorder %s64, %s80
      %p82 = scmp.eq.s32.totalorder %s44, 0
      %p83 = por %p81, %p82
      %s84 = ssub.s32 %s45, %s57
      %s85 = ssub.s32 %s46, %s53
      %s86 = sor.u32 %s84, %s85
      %p87 = scmp.eq.s32.totalorder %s86, 0
      %s89 = sadd.s32 %s88, 1
      %s90 = scalar_select %p87, %s88, %s89
      %p93 = pneg %p87
      %p94 = scmp.eq.s32.totalorder %s38, 7
      %p95 = por %p93, %p94
      %p96 = scmp.ne.s32.totalorder %s88, %s91
      %p97 = scmp.eq.s32.totalorder %s38, 0
      %p98 = por %p96, %p97
      %p99 = scmp.ne.s32.totalorder %s88, %s91
      %p100 = scmp.eq.s32.totalorder %s43, 7
      %p101 = por %p99, %p100
      %p102 = scmp.ne.s32.totalorder %s91, %s92
      %p103 = scmp.eq.s32.totalorder %s43, 0
      %p104 = por %p102, %p103
      %p105 = scmp.ne.s32.totalorder %s91, %s92
      %p106 = scmp.eq.s32.totalorder %s44, 7
      %p107 = por %p105, %p106
      %p109 = scmp.ne.s32.totalorder %s92, %s108
      %p110 = scmp.eq.s32.totalorder %s44, 0
      %p111 = por %p109, %p110
      %s112 = ssub.s32 %s46, %s53
      %p113 = scmp.eq.s32.totalorder %s112, 0
      %s115 = sadd.s32 %s114, 1
      %s116 = scalar_select %p113, %s114, %s115
      %p119 = pneg %p113
      %p120 = scmp.eq.s32.totalorder %s38, 7
      %p121 = por %p119, %p120
      %p122 = scmp.ne.s32.totalorder %s114, %s117
      %p123 = scmp.eq.s32.totalorder %s38, 0
      %p124 = por %p122, %p123
      %p125 = scmp.ne.s32.totalorder %s114, %s117
      %p126 = scmp.eq.s32.totalorder %s43, 7
      %p127 = por %p125, %p126
      %p128 = scmp.ne.s32.totalorder %s117, %s118
      %p129 = scmp.eq.s32.totalorder %s43, 0
      %p130 = por %p128, %p129
      %p131 = scmp.ne.s32.totalorder %s117, %s118
      %p132 = scmp.eq.s32.totalorder %s44, 7
      %p133 = por %p131, %p132
      %p135 = scmp.ne.s32.totalorder %s118, %s134
      %p136 = scmp.eq.s32.totalorder %s44, 0
      %p137 = por %p135, %p136
      %s138 = ssub.s32 %s46, %s53
      %p139 = scmp.eq.s32.totalorder %s138, 0
      %s141 = sadd.s32 %s140, 1
      %s142 = scalar_select %p139, %s140, %s141
      %p145 = pneg %p139
      %p146 = scmp.eq.s32.totalorder %s38, 7
      %p147 = por %p145, %p146
      %p148 = scmp.ne.s32.totalorder %s140, %s143
      %p149 = scmp.eq.s32.totalorder %s38, 0
      %p150 = por %p148, %p149
      %p151 = scmp.ne.s32.totalorder %s140, %s143
      %p152 = scmp.eq.s32.totalorder %s43, 7
      %p153 = por %p151, %p152
      %p154 = scmp.ne.s32.totalorder %s143, %s144
      %p155 = scmp.eq.s32.totalorder %s43, 0
      %p156 = por %p154, %p155
      %p157 = scmp.ne.s32.totalorder %s143, %s144
      %p158 = scmp.eq.s32.totalorder %s44, 7
      %p159 = por %p157, %p158
      %p161 = scmp.ne.s32.totalorder %s144, %s160
      %p162 = scmp.eq.s32.totalorder %s44, 0
      %p163 = por %p161, %p162
      %s164 = ssub.s32 %s46, %s53
      %p165 = scmp.eq.s32.totalorder %s164, 0
      %s167 = sadd.s32 %s166, 1
      %s168 = scalar_select %p165, %s166, %s167
      %p171 = pneg %p165
      %p172 = scmp.eq.s32.totalorder %s38, 7
      %p173 = por %p171, %p172
      %p174 = scmp.ne.s32.totalorder %s166, %s169
      %p175 = scmp.eq.s32.totalorder %s38, 0
      %p176 = por %p174, %p175
      %p177 = scmp.ne.s32.totalorder %s166, %s169
      %p178 = scmp.eq.s32.totalorder %s43, 7
      %p179 = por %p177, %p178
      %p180 = scmp.ne.s32.totalorder %s169, %s170
      %p181 = scmp.eq.s32.totalorder %s43, 0
      %p182 = por %p180, %p181
      %p183 = scmp.ne.s32.totalorder %s169, %s170
      %p184 = scmp.eq.s32.totalorder %s44, 7
      %p185 = por %p183, %p184
      %p187 = scmp.ne.s32.totalorder %s170, %s186
      %p188 = scmp.eq.s32.totalorder %s44, 0
      %p189 = por %p187, %p188
      %s190 = ssub.s32 %s46, %s53
      %p191 = scmp.eq.s32.totalorder %s190, 0
      %s193 = sadd.s32 %s192, 1
      %s194 = scalar_select %p191, %s192, %s193
      %p197 = pneg %p191
      %p198 = scmp.eq.s32.totalorder %s38, 7
      %p199 = por %p197, %p198
      %p200 = scmp.ne.s32.totalorder %s192, %s195
      %p201 = scmp.eq.s32.totalorder %s38, 0
      %p202 = por %p200, %p201
      %p203 = scmp.ne.s32.totalorder %s192, %s195
      %p204 = scmp.eq.s32.totalorder %s43, 7
      %p205 = por %p203, %p204
      %p206 = scmp.ne.s32.totalorder %s195, %s196
      %p207 = scmp.eq.s32.totalorder %s43, 0
      %p208 = por %p206, %p207
      %p209 = scmp.ne.s32.totalorder %s195, %s196
      %p210 = scmp.eq.s32.totalorder %s44, 7
      %p211 = por %p209, %p210
      %p213 = scmp.ne.s32.totalorder %s196, %s212
      %p214 = scmp.eq.s32.totalorder %s44, 0
      %p215 = por %p213, %p214
      %s216 = ssub.s32 %s46, %s53
      %p217 = scmp.eq.s32.totalorder %s216, 0
      %s219 = sadd.s32 %s218, 1
      %s220 = scalar_select %p217, %s218, %s219
      %p223 = pneg %p217
      %p224 = scmp.eq.s32.totalorder %s38, 7
      %p225 = por %p223, %p224
      %p226 = scmp.ne.s32.totalorder %s218, %s221
      %p227 = scmp.eq.s32.totalorder %s38, 0
      %p228 = por %p226, %p227
      %p229 = scmp.ne.s32.totalorder %s218, %s221
      %p230 = scmp.eq.s32.totalorder %s43, 7
      %p231 = por %p229, %p230
      %p232 = scmp.ne.s32.totalorder %s221, %s222
      %p233 = scmp.eq.s32.totalorder %s43, 0
      %p234 = por %p232, %p233
      %p235 = scmp.ne.s32.totalorder %s221, %s222
      %p236 = scmp.eq.s32.totalorder %s44, 7
      %p237 = por %p235, %p236
      %p239 = scmp.ne.s32.totalorder %s222, %s238
      %p240 = scmp.eq.s32.totalorder %s44, 0
      %p241 = por %p239, %p240
      %s242 = ssub.s32 %s46, %s53
      %p243 = scmp.eq.s32.totalorder %s242, 0
      %s245 = sadd.s32 %s244, 1
      %s246 = scalar_select %p243, %s244, %s245
      %p249 = pneg %p243
      %p250 = scmp.eq.s32.totalorder %s38, 7
      %p251 = por %p249, %p250
      %p252 = scmp.ne.s32.totalorder %s244, %s247
      %p253 = scmp.eq.s32.totalorder %s38, 0
      %p254 = por %p252, %p253
      %p255 = scmp.ne.s32.totalorder %s244, %s247
      %p256 = scmp.eq.s32.totalorder %s43, 7
      %p257 = por %p255, %p256
      %p258 = scmp.ne.s32.totalorder %s247, %s248
      %p259 = scmp.eq.s32.totalorder %s43, 0
      %p260 = por %p258, %p259
      %p261 = scmp.ne.s32.totalorder %s247, %s248
      %p262 = scmp.eq.s32.totalorder %s44, 7
      %p263 = por %p261, %p262
      %p265 = scmp.ne.s32.totalorder %s248, %s264
      %p266 = scmp.eq.s32.totalorder %s44, 0
      %p267 = por %p265, %p266
      %s268 = ssub.s32 %s46, %s53
      %p269 = scmp.eq.s32.totalorder %s268, 0
      %s271 = sadd.s32 %s270, 1
      %s272 = scalar_select %p269, %s270, %s271
      %p275 = pneg %p269
      %p276 = scmp.eq.s32.totalorder %s38, 7
      %p277 = por %p275, %p276
      %p278 = scmp.ne.s32.totalorder %s270, %s273
      %p279 = scmp.eq.s32.totalorder %s38, 0
      %p280 = por %p278, %p279
      %p281 = scmp.ne.s32.totalorder %s270, %s273
      %p282 = scmp.eq.s32.totalorder %s43, 7
      %p283 = por %p281, %p282
      %p284 = scmp.ne.s32.totalorder %s273, %s274
      %p285 = scmp.eq.s32.totalorder %s43, 0
      %p286 = por %p284, %p285
      %p287 = scmp.ne.s32.totalorder %s273, %s274
      %p288 = scmp.eq.s32.totalorder %s44, 7
      %p289 = por %p287, %p288
      %p291 = scmp.ne.s32.totalorder %s274, %s290
      %p292 = scmp.eq.s32.totalorder %s44, 0
      %p293 = por %p291, %p292
      %s295 = sadd.s32 %s294, 1
      %p298 = scmp.eq.s32.totalorder %s38, 7
      %p299 = scmp.ne.s32.totalorder %s294, %s296
      %p300 = scmp.eq.s32.totalorder %s38, 0
      %p301 = por %p299, %p300
      %p302 = scmp.ne.s32.totalorder %s294, %s296
      %p303 = scmp.eq.s32.totalorder %s43, 7
      %p304 = por %p302, %p303
      %p305 = scmp.ne.s32.totalorder %s296, %s297
      %p306 = scmp.eq.s32.totalorder %s43, 0
      %p307 = por %p305, %p306
      %p308 = scmp.ne.s32.totalorder %s296, %s297
      %p309 = scmp.eq.s32.totalorder %s44, 7
      %p310 = por %p308, %p309
      %p312 = scmp.ne.s32.totalorder %s297, %s311
      %p313 = scmp.eq.s32.totalorder %s44, 0
      %p314 = por %p312, %p313
      %s316 = sadd.s32 %s315, 1
      %p319 = scmp.eq.s32.totalorder %s38, 7
      %p320 = scmp.ne.s32.totalorder %s315, %s317
      %p321 = scmp.eq.s32.totalorder %s38, 0
      %p322 = por %p320, %p321
      %p323 = scmp.ne.s32.totalorder %s315, %s317
      %p324 = scmp.eq.s32.totalorder %s43, 7
      %p325 = por %p323, %p324
      %p326 = scmp.ne.s32.totalorder %s317, %s318
      %p327 = scmp.eq.s32.totalorder %s43, 0
      %p328 = por %p326, %p327
      %p329 = scmp.ne.s32.totalorder %s317, %s318
      %p330 = scmp.eq.s32.totalorder %s44, 7
      %p331 = por %p329, %p330
      %p333 = scmp.ne.s32.totalorder %s318, %s332
      %p334 = scmp.eq.s32.totalorder %s44, 0
      %p335 = por %p333, %p334
      %s337 = sadd.s32 %s336, 1
      %p340 = scmp.eq.s32.totalorder %s38, 7
      %p341 = scmp.ne.s32.totalorder %s336, %s338
      %p342 = scmp.eq.s32.totalorder %s38, 0
      %p343 = por %p341, %p342
      %p344 = scmp.ne.s32.totalorder %s336, %s338
      %p345 = scmp.eq.s32.totalorder %s43, 7
      %p346 = por %p344, %p345
      %p347 = scmp.ne.s32.totalorder %s338, %s339
      %p348 = scmp.eq.s32.totalorder %s43, 0
      %p349 = por %p347, %p348
      %p350 = scmp.ne.s32.totalorder %s338, %s339
      %p351 = scmp.eq.s32.totalorder %s44, 7
      %p352 = por %p350, %p351
      %p354 = scmp.ne.s32.totalorder %s339, %s353
      %p355 = scmp.eq.s32.totalorder %s44, 0
      %p356 = por %p354, %p355
      %s357 = ssub.s32 %s45, %s57
      %p358 = scmp.eq.s32.totalorder %s357, 0
      %s360 = sadd.s32 %s359, 1
      %s361 = scalar_select %p358, %s359, %s360
      %p364 = pneg %p358
      %p365 = scmp.eq.s32.totalorder %s38, 7
      %p366 = por %p364, %p365
      %p367 = scmp.ne.s32.totalorder %s359, %s362
      %p368 = scmp.eq.s32.totalorder %s38, 0
      %p369 = por %p367, %p368
      %p370 = scmp.ne.s32.totalorder %s359, %s362
      %p371 = scmp.eq.s32.totalorder %s43, 7
      %p372 = por %p370, %p371
      %p373 = scmp.ne.s32.totalorder %s362, %s363
      %p374 = scmp.eq.s32.totalorder %s43, 0
      %p375 = por %p373, %p374
      %p376 = scmp.ne.s32.totalorder %s362, %s363
      %p377 = scmp.eq.s32.totalorder %s44, 7
      %p378 = por %p376, %p377
      %p380 = scmp.ne.s32.totalorder %s363, %s379
      %p381 = scmp.eq.s32.totalorder %s44, 0
      %p382 = por %p380, %p381
      %p383 = scmp.le.s32.totalorder 1, %s38
      %p384 = scmp.lt.s32.totalorder %s38, 9
      %p385 = pnand %p383, %p384
      %p386 = pneg %p385
      // Predicated region
      $region9: #{tpu_custom_call.1} parent=5 // pred_check
        _
      $region10: #{tpu_custom_call.1} parent=5 // pred_check_branch
        %388 = sbr.rel (%p385) target = $region12
      $region11: #{tpu_custom_call.1} parent=5 // pred_region
        %s389 = ssub.s32 %s38, 1
        // Predicated region
        $region13: #{tpu_custom_call.1} parent=11 // pred_check
          %p390 = pneg %p307
        $region14: #{tpu_custom_call.1} parent=11 // pred_check_branch
          %392 = sbr.rel (%p390) target = $region16
        $region15: #{tpu_custom_call.1} parent=11 // pred_region
          %s394 = ssub.s32 16, 16
          %395 = vsyncadd [#allocation19], %s394
          %s397 = sshll.u32 [#allocation18], 4
          %s398 = int_to_ptr.vmem [resolvable:$true] %s397
          %400 = dma.hbm_to_vmem [thread:$0]  %s9, 16, %s398, [#allocation19]
        $region16: #{tpu_custom_call.1} parent=11 // pred_fallthru
          _
        // Predicated region
        $region17: #{tpu_custom_call.1} parent=11 // pred_check
          %p401 = pneg %p328
        $region18: #{tpu_custom_call.1} parent=11 // pred_check_branch
          %403 = sbr.rel (%p401) target = $region20
        $region19: #{tpu_custom_call.1} parent=11 // pred_region
          %s405 = ssub.s32 16, 16
          %406 = vsyncadd [#allocation19], %s405
          %s408 = sshll.u32 [#allocation20], 4
          %s409 = int_to_ptr.vmem [resolvable:$true] %s408
          %411 = dma.hbm_to_vmem [thread:$0]  %s10, 16, %s409, [#allocation19]
        $region20: #{tpu_custom_call.1} parent=11 // pred_fallthru
          _
        // Predicated region
        $region21: #{tpu_custom_call.1} parent=11 // pred_check
          %p412 = pneg %p349
        $region22: #{tpu_custom_call.1} parent=11 // pred_check_branch
          %414 = sbr.rel (%p412) target = $region24
        $region23: #{tpu_custom_call.1} parent=11 // pred_region
          %s416 = ssub.s32 16, 16
          %417 = vsyncadd [#allocation22], %s416
          %s419 = sshll.u32 [#allocation21], 4
          %s420 = int_to_ptr.vmem [resolvable:$true] %s419
          %422 = dma.hbm_to_vmem [thread:$0]  %s11, 16, %s420, [#allocation22]
        $region24: #{tpu_custom_call.1} parent=11 // pred_fallthru
          _
      $region12: #{tpu_custom_call.1} parent=5 // pred_fallthru
        _
      %p423 = scmp.lt.s32.totalorder %s38, 8
      // Predicated region
      $region25: #{tpu_custom_call.1} parent=5 // pred_check
        %p424 = pneg %p423
      $region26: #{tpu_custom_call.1} parent=5 // pred_check_branch
        %426 = sbr.rel (%p424) target = $region28
      $region27: #{tpu_custom_call.1} parent=5 // pred_region
        // Predicated region
        $region29: #{tpu_custom_call.1} parent=27 // pred_check
          %p427 = pneg %p70
        $region30: #{tpu_custom_call.1} parent=27 // pred_check_branch
          %429 = sbr.rel (%p427) target = $region32
        $region31: #{tpu_custom_call.1} parent=27 // pred_region
          %s430 = sand.u32 %s60, 1
          %s431 = scalar_lea.sflag [#allocation4], %s430
          %s432 = sand.u32 %s60, 1
          %s433 = smul.addr %s432, 8
          %s434 = scalar_lea.vmem [#allocation3], %s433
          %s436 = ssub.s32 128, 128
          %437 = vsyncadd %s431, %s436
          %s438 = smul.addr %s45, 128
          %s439 = scalar_lea.hbm %s0, %s438
          %s441 = sshll.u32 %s434, 4
          %s442 = int_to_ptr.vmem [resolvable:$true] %s441
          %444 = dma.hbm_to_vmem [thread:$0]  %s439, 128, %s442, %s431
        $region32: #{tpu_custom_call.1} parent=27 // pred_fallthru
          _
        // Predicated region
        $region33: #{tpu_custom_call.1} parent=27 // pred_check
          %p445 = pneg %p98
        $region34: #{tpu_custom_call.1} parent=27 // pred_check_branch
          %447 = sbr.rel (%p445) target = $region36
        $region35: #{tpu_custom_call.1} parent=27 // pred_region
          %s448 = sand.u32 %s38, 1
          %s449 = scalar_lea.sflag [#allocation7], %s448
          %s450 = sand.u32 %s88, 1
          %s451 = smul.addr %s450, 8
          %s452 = scalar_lea.vmem [#allocation6], %s451
          %s454 = ssub.s32 128, 128
          %455 = vsyncadd %s449, %s454
          %s456 = smul.addr %s45, 4
          %s457 = sadd.s32 %s46, %s456
          %s458 = smul.addr %s457, 128
          %s459 = scalar_lea.hbm %s1, %s458
          %s461 = sshll.u32 %s452, 4
          %s462 = int_to_ptr.vmem [resolvable:$true] %s461
          %464 = dma.hbm_to_vmem [thread:$0]  %s459, 128, %s462, %s449
        $region36: #{tpu_custom_call.1} parent=27 // pred_fallthru
          _
        // Predicated region
        $region37: #{tpu_custom_call.1} parent=27 // pred_check
          %p465 = pneg %p124
        $region38: #{tpu_custom_call.1} parent=27 // pred_check_branch
          %467 = sbr.rel (%p465) target = $region40
        $region39: #{tpu_custom_call.1} parent=27 // pred_region
          %s468 = sand.u32 %s38, 1
          %s469 = scalar_lea.sflag [#allocation7], %s468
          %s470 = sand.u32 %s114, 1
          %s471 = smul.addr %s470, 32
          %s472 = scalar_lea.vmem [#allocation8], %s471
          %s474 = ssub.s32 512, 512
          %475 = vsyncadd %s469, %s474
          %s476 = smul.addr %s46, 4
          %s477 = smul.addr %s476, 128
          %s478 = scalar_lea.hbm %s2, %s477
          %s479 = sshll.u32 %s472, 4
          %s480 = int_to_ptr.vmem [resolvable:$true] %s479
          %485 = dma.hbm_to_vmem [thread:$0]  %s478, 512, %s480, %s469, 128, 128, 8
        $region40: #{tpu_custom_call.1} parent=27 // pred_fallthru
          _
        // Predicated region
        $region41: #{tpu_custom_call.1} parent=27 // pred_check
          %p486 = pneg %p150
        $region42: #{tpu_custom_call.1} parent=27 // pred_check_branch
          %488 = sbr.rel (%p486) target = $region44
        $region43: #{tpu_custom_call.1} parent=27 // pred_region
          %s489 = sand.u32 %s38, 1
          %s490 = scalar_lea.sflag [#allocation10], %s489
          %s491 = sand.u32 %s140, 1
          %s492 = scalar_lea.vmem [#allocation9], %s491
          %s494 = ssub.s32 16, 16
          %495 = vsyncadd %s490, %s494
          %s496 = smul.addr %s46, 16
          %s497 = scalar_lea.hbm %s3, %s496
          %s499 = sshll.u32 %s492, 4
          %s500 = int_to_ptr.vmem [resolvable:$true] %s499
          %502 = dma.hbm_to_vmem [thread:$0]  %s497, 16, %s500, %s490
        $region44: #{tpu_custom_call.1} parent=27 // pred_fallthru
          _
        // Predicated region
        $region45: #{tpu_custom_call.1} parent=27 // pred_check
          %p503 = pneg %p176
        $region46: #{tpu_custom_call.1} parent=27 // pred_check_branch
          %505 = sbr.rel (%p503) target = $region48
        $region47: #{tpu_custom_call.1} parent=27 // pred_region
          %s506 = sand.u32 %s38, 1
          %s507 = scalar_lea.sflag [#allocation10], %s506
          %s508 = sand.u32 %s166, 1
          %s509 = smul.addr %s508, 32
          %s510 = scalar_lea.vmem [#allocation11], %s509
          %s512 = ssub.s32 512, 512
          %513 = vsyncadd %s507, %s512
          %s514 = smul.addr %s46, 4
          %s515 = smul.addr %s514, 128
          %s516 = scalar_lea.hbm %s4, %s515
          %s517 = sshll.u32 %s510, 4
          %s518 = int_to_ptr.vmem [resolvable:$true] %s517
          %523 = dma.hbm_to_vmem [thread:$0]  %s516, 512, %s518, %s507, 128, 128, 8
        $region48: #{tpu_custom_call.1} parent=27 // pred_fallthru
          _
        // Predicated region
        $region49: #{tpu_custom_call.1} parent=27 // pred_check
          %p524 = pneg %p202
        $region50: #{tpu_custom_call.1} parent=27 // pred_check_branch
          %526 = sbr.rel (%p524) target = $region52
        $region51: #{tpu_custom_call.1} parent=27 // pred_region
          %s527 = sand.u32 %s38, 1
          %s528 = scalar_lea.sflag [#allocation13], %s527
          %s529 = sand.u32 %s192, 1
          %s530 = scalar_lea.vmem [#allocation12], %s529
          %s532 = ssub.s32 16, 16
          %533 = vsyncadd %s528, %s532
          %s534 = smul.addr %s46, 16
          %s535 = scalar_lea.hbm %s5, %s534
          %s537 = sshll.u32 %s530, 4
          %s538 = int_to_ptr.vmem [resolvable:$true] %s537
          %540 = dma.hbm_to_vmem [thread:$0]  %s535, 16, %s538, %s528
        $region52: #{tpu_custom_call.1} parent=27 // pred_fallthru
          _
        // Predicated region
        $region53: #{tpu_custom_call.1} parent=27 // pred_check
          %p541 = pneg %p228
        $region54: #{tpu_custom_call.1} parent=27 // pred_check_branch
          %543 = sbr.rel (%p541) target = $region56
        $region55: #{tpu_custom_call.1} parent=27 // pred_region
          %s544 = sand.u32 %s38, 1
          %s545 = scalar_lea.sflag [#allocation13], %s544
          %s546 = sand.u32 %s218, 1
          %s547 = smul.addr %s546, 32
          %s548 = scalar_lea.vmem [#allocation14], %s547
          %s550 = ssub.s32 512, 512
          %551 = vsyncadd %s545, %s550
          %s552 = smul.addr %s46, 4
          %s553 = smul.addr %s552, 128
          %s554 = scalar_lea.hbm %s6, %s553
          %s555 = sshll.u32 %s548, 4
          %s556 = int_to_ptr.vmem [resolvable:$true] %s555
          %561 = dma.hbm_to_vmem [thread:$0]  %s554, 512, %s556, %s545, 128, 128, 8
        $region56: #{tpu_custom_call.1} parent=27 // pred_fallthru
          _
        // Predicated region
        $region57: #{tpu_custom_call.1} parent=27 // pred_check
          %p562 = pneg %p254
        $region58: #{tpu_custom_call.1} parent=27 // pred_check_branch
          %564 = sbr.rel (%p562) target = $region60
        $region59: #{tpu_custom_call.1} parent=27 // pred_region
          %s565 = sand.u32 %s38, 1
          %s566 = scalar_lea.sflag [#allocation16], %s565
          %s567 = sand.u32 %s244, 1
          %s568 = scalar_lea.vmem [#allocation15], %s567
          %s570 = ssub.s32 16, 16
          %571 = vsyncadd %s566, %s570
          %s572 = smul.addr %s46, 16
          %s573 = scalar_lea.hbm %s7, %s572
          %s575 = sshll.u32 %s568, 4
          %s576 = int_to_ptr.vmem [resolvable:$true] %s575
          %578 = dma.hbm_to_vmem [thread:$0]  %s573, 16, %s576, %s566
        $region60: #{tpu_custom_call.1} parent=27 // pred_fallthru
          _
        // Predicated region
        $region61: #{tpu_custom_call.1} parent=27 // pred_check
          %p579 = pneg %p280
        $region62: #{tpu_custom_call.1} parent=27 // pred_check_branch
          %581 = sbr.rel (%p579) target = $region64
        $region63: #{tpu_custom_call.1} parent=27 // pred_region
          %s582 = sand.u32 %s38, 1
          %s583 = scalar_lea.sflag [#allocation16], %s582
          %s584 = sand.u32 %s270, 1
          %s585 = smul.addr %s584, 8
          %s586 = scalar_lea.vmem [#allocation17], %s585
          %s588 = ssub.s32 128, 128
          %589 = vsyncadd %s583, %s588
          %s590 = smul.addr %s46, 128
          %s591 = scalar_lea.hbm %s8, %s590
          %s593 = sshll.u32 %s586, 4
          %s594 = int_to_ptr.vmem [resolvable:$true] %s593
          %596 = dma.hbm_to_vmem [thread:$0]  %s591, 128, %s594, %s583
        $region64: #{tpu_custom_call.1} parent=27 // pred_fallthru
          _
      $region28: #{tpu_custom_call.1} parent=5 // pred_fallthru
        _
      %p597 = scmp.le.s32.totalorder 1, %s38
      %p598 = scmp.lt.s32.totalorder %s38, 9
      %p599 = pnand %p597, %p598
      %p600 = pneg %p599
      // Predicated region
      $region65: #{tpu_custom_call.1} parent=5 // pred_check
        _
      $region66: #{tpu_custom_call.1} parent=5 // pred_check_branch
        %602 = sbr.rel (%p599) target = $region68
      $region67: #{tpu_custom_call.1} parent=5 // pred_region
        %s603 = ssub.s32 %s38, 1
        %s604 = sand.u32 %s63, 1
        %s605 = scalar_lea.sflag [#allocation4], %s604
        %s606 = sand.u32 %s63, 1
        %s607 = smul.addr %s606, 8
        %s608 = scalar_lea.vmem [#allocation3], %s607
        // Predicated region
        $region69: #{tpu_custom_call.1} parent=67 // pred_check
          %p609 = pneg %p76
        $region70: #{tpu_custom_call.1} parent=67 // pred_check_branch
          %611 = sbr.rel (%p609) target = $region72
        $region71: #{tpu_custom_call.1} parent=67 // pred_region
          %612 = dma.done %s605, 128
        $region72: #{tpu_custom_call.1} parent=67 // pred_fallthru
          _
        %s613 = sand.u32 %s43, 1
        %s614 = scalar_lea.sflag [#allocation7], %s613
        %s615 = sand.u32 %s91, 1
        %s616 = smul.addr %s615, 8
        %s617 = scalar_lea.vmem [#allocation6], %s616
        // Predicated region
        $region73: #{tpu_custom_call.1} parent=67 // pred_check
          %p618 = pneg %p104
        $region74: #{tpu_custom_call.1} parent=67 // pred_check_branch
          %620 = sbr.rel (%p618) target = $region76
        $region75: #{tpu_custom_call.1} parent=67 // pred_region
          %621 = dma.done %s614, 128
        $region76: #{tpu_custom_call.1} parent=67 // pred_fallthru
          _
        %s622 = sand.u32 %s43, 1
        %s623 = scalar_lea.sflag [#allocation7], %s622
        %s624 = sand.u32 %s117, 1
        %s625 = smul.addr %s624, 32
        %s626 = scalar_lea.vmem [#allocation8], %s625
        // Predicated region
        $region77: #{tpu_custom_call.1} parent=67 // pred_check
          %p627 = pneg %p130
        $region78: #{tpu_custom_call.1} parent=67 // pred_check_branch
          %629 = sbr.rel (%p627) target = $region80
        $region79: #{tpu_custom_call.1} parent=67 // pred_region
          %630 = dma.done %s623, 512
        $region80: #{tpu_custom_call.1} parent=67 // pred_fallthru
          _
        %s631 = sand.u32 %s43, 1
        %s632 = scalar_lea.sflag [#allocation10], %s631
        %s633 = sand.u32 %s143, 1
        %s634 = scalar_lea.vmem [#allocation9], %s633
        // Predicated region
        $region81: #{tpu_custom_call.1} parent=67 // pred_check
          %p635 = pneg %p156
        $region82: #{tpu_custom_call.1} parent=67 // pred_check_branch
          %637 = sbr.rel (%p635) target = $region84
        $region83: #{tpu_custom_call.1} parent=67 // pred_region
          %638 = dma.done %s632, 16
        $region84: #{tpu_custom_call.1} parent=67 // pred_fallthru
          _
        %s639 = sand.u32 %s43, 1
        %s640 = scalar_lea.sflag [#allocation10], %s639
        %s641 = sand.u32 %s169, 1
        %s642 = smul.addr %s641, 32
        %s643 = scalar_lea.vmem [#allocation11], %s642
        // Predicated region
        $region85: #{tpu_custom_call.1} parent=67 // pred_check
          %p644 = pneg %p182
        $region86: #{tpu_custom_call.1} parent=67 // pred_check_branch
          %646 = sbr.rel (%p644) target = $region88
        $region87: #{tpu_custom_call.1} parent=67 // pred_region
          %647 = dma.done %s640, 512
        $region88: #{tpu_custom_call.1} parent=67 // pred_fallthru
          _
        %s648 = sand.u32 %s43, 1
        %s649 = scalar_lea.sflag [#allocation13], %s648
        %s650 = sand.u32 %s195, 1
        %s651 = scalar_lea.vmem [#allocation12], %s650
        // Predicated region
        $region89: #{tpu_custom_call.1} parent=67 // pred_check
          %p652 = pneg %p208
        $region90: #{tpu_custom_call.1} parent=67 // pred_check_branch
          %654 = sbr.rel (%p652) target = $region92
        $region91: #{tpu_custom_call.1} parent=67 // pred_region
          %655 = dma.done %s649, 16
        $region92: #{tpu_custom_call.1} parent=67 // pred_fallthru
          _
        %s656 = sand.u32 %s43, 1
        %s657 = scalar_lea.sflag [#allocation13], %s656
        %s658 = sand.u32 %s221, 1
        %s659 = smul.addr %s658, 32
        %s660 = scalar_lea.vmem [#allocation14], %s659
        // Predicated region
        $region93: #{tpu_custom_call.1} parent=67 // pred_check
          %p661 = pneg %p234
        $region94: #{tpu_custom_call.1} parent=67 // pred_check_branch
          %663 = sbr.rel (%p661) target = $region96
        $region95: #{tpu_custom_call.1} parent=67 // pred_region
          %664 = dma.done %s657, 512
        $region96: #{tpu_custom_call.1} parent=67 // pred_fallthru
          _
        %s665 = sand.u32 %s43, 1
        %s666 = scalar_lea.sflag [#allocation16], %s665
        %s667 = sand.u32 %s247, 1
        %s668 = scalar_lea.vmem [#allocation15], %s667
        // Predicated region
        $region97: #{tpu_custom_call.1} parent=67 // pred_check
          %p669 = pneg %p260
        $region98: #{tpu_custom_call.1} parent=67 // pred_check_branch
          %671 = sbr.rel (%p669) target = $region100
        $region99: #{tpu_custom_call.1} parent=67 // pred_region
          %672 = dma.done %s666, 16
        $region100: #{tpu_custom_call.1} parent=67 // pred_fallthru
          _
        %s673 = sand.u32 %s43, 1
        %s674 = scalar_lea.sflag [#allocation16], %s673
        %s675 = sand.u32 %s273, 1
        %s676 = smul.addr %s675, 8
        %s677 = scalar_lea.vmem [#allocation17], %s676
        // Predicated region
        $region101: #{tpu_custom_call.1} parent=67 // pred_check
          %p678 = pneg %p286
        $region102: #{tpu_custom_call.1} parent=67 // pred_check_branch
          %680 = sbr.rel (%p678) target = $region104
        $region103: #{tpu_custom_call.1} parent=67 // pred_region
          %681 = dma.done %s674, 128
        $region104: #{tpu_custom_call.1} parent=67 // pred_fallthru
          _
        // Predicated region
        $region105: #{tpu_custom_call.1} parent=67 // pred_check
          %p682 = pneg %p307
        $region106: #{tpu_custom_call.1} parent=67 // pred_check_branch
          %684 = sbr.rel (%p682) target = $region108
        $region107: #{tpu_custom_call.1} parent=67 // pred_region
          %685 = dma.done [#allocation19], 16
        $region108: #{tpu_custom_call.1} parent=67 // pred_fallthru
          _
        // Predicated region
        $region109: #{tpu_custom_call.1} parent=67 // pred_check
          %p686 = pneg %p328
        $region110: #{tpu_custom_call.1} parent=67 // pred_check_branch
          %688 = sbr.rel (%p686) target = $region112
        $region111: #{tpu_custom_call.1} parent=67 // pred_region
          %689 = dma.done [#allocation19], 16
        $region112: #{tpu_custom_call.1} parent=67 // pred_fallthru
          _
        // Predicated region
        $region113: #{tpu_custom_call.1} parent=67 // pred_check
          %p690 = pneg %p349
        $region114: #{tpu_custom_call.1} parent=67 // pred_check_branch
          %692 = sbr.rel (%p690) target = $region116
        $region115: #{tpu_custom_call.1} parent=67 // pred_region
          %693 = dma.done [#allocation22], 16
        $region116: #{tpu_custom_call.1} parent=67 // pred_fallthru
          _
        %s694 = sand.u32 %s63, 1
        %s695 = scalar_lea.sflag [#allocation4], %s694
        %s696 = sand.u32 %s63, 1
        %s697 = smul.addr %s696, 8
        %s698 = scalar_lea.vmem [#allocation3], %s697
        %p699 = pneg %p76
        %p700 = pneg %p73
        %s701 = sand.u32 %s43, 1
        %s702 = scalar_lea.sflag [#allocation7], %s701
        %s703 = sand.u32 %s91, 1
        %s704 = smul.addr %s703, 8
        %s705 = scalar_lea.vmem [#allocation6], %s704
        %p706 = pneg %p104
        %p707 = pneg %p101
        %s708 = sand.u32 %s43, 1
        %s709 = scalar_lea.sflag [#allocation7], %s708
        %s710 = sand.u32 %s117, 1
        %s711 = smul.addr %s710, 32
        %s712 = scalar_lea.vmem [#allocation8], %s711
        %p713 = pneg %p130
        %p714 = pneg %p127
        %s715 = sand.u32 %s43, 1
        %s716 = scalar_lea.sflag [#allocation10], %s715
        %s717 = sand.u32 %s143, 1
        %s718 = scalar_lea.vmem [#allocation9], %s717
        %p719 = pneg %p156
        %p720 = pneg %p153
        %s721 = sand.u32 %s43, 1
        %s722 = scalar_lea.sflag [#allocation10], %s721
        %s723 = sand.u32 %s169, 1
        %s724 = smul.addr %s723, 32
        %s725 = scalar_lea.vmem [#allocation11], %s724
        %p726 = pneg %p182
        %p727 = pneg %p179
        %s728 = sand.u32 %s43, 1
        %s729 = scalar_lea.sflag [#allocation13], %s728
        %s730 = sand.u32 %s195, 1
        %s731 = scalar_lea.vmem [#allocation12], %s730
        %p732 = pneg %p208
        %p733 = pneg %p205
        %s734 = sand.u32 %s43, 1
        %s735 = scalar_lea.sflag [#allocation13], %s734
        %s736 = sand.u32 %s221, 1
        %s737 = smul.addr %s736, 32
        %s738 = scalar_lea.vmem [#allocation14], %s737
        %p739 = pneg %p234
        %p740 = pneg %p231
        %s741 = sand.u32 %s43, 1
        %s742 = scalar_lea.sflag [#allocation16], %s741
        %s743 = sand.u32 %s247, 1
        %s744 = scalar_lea.vmem [#allocation15], %s743
        %p745 = pneg %p260
        %p746 = pneg %p257
        %s747 = sand.u32 %s43, 1
        %s748 = scalar_lea.sflag [#allocation16], %s747
        %s749 = sand.u32 %s273, 1
        %s750 = smul.addr %s749, 8
        %s751 = scalar_lea.vmem [#allocation17], %s750
        %p752 = pneg %p286
        %p753 = pneg %p283
        %p754 = pneg %p307
        %p755 = pneg %p304
        %p756 = pneg %p328
        %p757 = pneg %p325
        %p758 = pneg %p349
        %p759 = pneg %p346
        %p760 = pneg %p375
        %p761 = pneg %p372
        %s762 = sand.u32 %s362, 1
        %s763 = scalar_lea.sflag [#allocation5], %s762
        %s764 = sand.u32 %s362, 1
        %s765 = smul.addr %s764, 8
        %s766 = scalar_lea.vmem [#allocation23], %s765
        %v767 = vld [vmem:[%s608] sm:$0xff]
        %v768 = vld [vmem:[%s626] sm:$0xff]
        %v769 = vld [vmem:[%s626 + $0x8] sm:$0xff]
        %v770 = vld [vmem:[%s626 + $0x10] sm:$0xff]
        %v771 = vld [vmem:[%s626 + $0x18] sm:$0xff]
        %v772 = vld [vmem:[%s634] sm:$0x1]
        %v774 = vlaneseq
        %v775 = vshrl.u32 %v774, 7
        %v776 = vsub.s32 0, %v775
        %v777 = vrot.slane %v772, %v776
        %vm779 = vcmask 261120
        %v781 = vsel %vm779, %v767, 0
        %783 = vmatprep.subr.mxu0 0.0
        %784 = vmatpush1.msra.mxu0 %v768
        %785 = vmatprep.subr.mxu0 0.0
        %786 = vmatpush1.msra.mxu0 %v769
        %787 = vmatprep.subr.mxu0 0.0
        %788 = vmatpush1.msra.mxu0 %v770
        %789 = vmatprep.subr.mxu0 0.0
        %790 = vmatpush1.msra.mxu0 %v771
        %791 = vmatprep.subr.mxu0 0.0
        %792 = vmatpush1.msra.mxu0 0.0
        %793 = vmatprep.subr.mxu0 0.0
        %794 = vmatpush1.msra.mxu0 0.0
        %795 = vmatprep.subr.mxu0 0.0
        %796 = vmatpush1.msra.mxu0 0.0
        %797 = vmatprep.subr.mxu0 0.0
        %798 = vmatpush1.msra.mxu0 0.0
        %799 = vmatprep.subr.mxu0 0.0
        %800 = vmatpush1.msra.mxu0 0.0
        %801 = vmatprep.subr.mxu0 0.0
        %802 = vmatpush1.msra.mxu0 0.0
        %803 = vmatprep.subr.mxu0 0.0
        %804 = vmatpush1.msra.mxu0 0.0
        %805 = vmatprep.subr.mxu0 0.0
        %806 = vmatpush1.msra.mxu0 0.0
        %807 = vmatprep.subr.mxu0 0.0
        %808 = vmatpush1.msra.mxu0 0.0
        %809 = vmatprep.subr.mxu0 0.0
        %810 = vmatpush1.msra.mxu0 0.0
        %811 = vmatprep.subr.mxu0 0.0
        %812 = vmatpush1.msra.mxu0 0.0
        %813 = vmatprep.subr.mxu0 0.0
        %814 = vmatpush1.msra.mxu0 0.0
        %815 = vmatprep.subr.mxu0 0.0
        %816 = vmatpush1.msra.mxu0 0.0
        %817 = vmatprep.subr.mxu0 0.0
        %818 = vmatpush1.msra.mxu0 0.0
        %819 = vmatprep.subr.mxu0 0.0
        %820 = vmatpush1.msra.mxu0 0.0
        %821 = vmatprep.subr.mxu0 0.0
        %822 = vmatpush1.msra.mxu0 0.0
        %823 = vmatprep.subr.mxu0 0.0
        %824 = vmatpush1.msra.mxu0 0.0
        %825 = vmatprep.subr.mxu0 0.0
        %826 = vmatpush1.msra.mxu0 0.0
        %827 = vmatprep.subr.mxu0 0.0
        %828 = vmatpush1.msra.mxu0 0.0
        %829 = vmatprep.subr.mxu0 0.0
        %830 = vmatpush1.msra.mxu0 0.0
        %831 = vmatprep.subr.mxu0 0.0
        %832 = vmatpush1.msra.mxu0 0.0
        %833 = vmatprep.subr.mxu0 0.0
        %834 = vmatpush1.msra.mxu0 0.0
        %835 = vmatprep.subr.mxu0 0.0
        %836 = vmatpush1.msra.mxu0 0.0
        %837 = vmatprep.subr.mxu0 0.0
        %838 = vmatpush1.msra.mxu0 0.0
        %839 = vmatprep.subr.mxu0 0.0
        %840 = vmatpush1.msra.mxu0 0.0
        %841 = vmatprep.subr.mxu0 0.0
        %842 = vmatpush1.msra.mxu0 0.0
        %843 = vmatprep.subr.mxu0 0.0
        %844 = vmatpush1.msra.mxu0 0.0
        %845 = vmatprep.subr.mxu0 0.0
        %846 = vmatpush1.msra.mxu0 0.0
        %847 = vmatprep.mubr.f32.mxu0 0.0
        %848 = vmatmul.mubr.f32.gmra.mrb[0].mxu0 %v781
        %v849 = vpop.f32.mrb[0].mxu0
        %v850 = vadd.f32 %v777, %v849
        %v851 = vpop.f32.mrb[0].mxu0
        %852 = vdwg.mxu0
        %v853 = vld [vmem:[%s643] sm:$0xff]
        %v854 = vld [vmem:[%s643 + $0x8] sm:$0xff]
        %v855 = vld [vmem:[%s643 + $0x10] sm:$0xff]
        %v856 = vld [vmem:[%s643 + $0x18] sm:$0xff]
        %v857 = vld [vmem:[%s651] sm:$0x1]
        %v859 = vlaneseq
        %v860 = vshrl.u32 %v859, 7
        %v861 = vsub.s32 0, %v860
        %v862 = vrot.slane %v857, %v861
        %864 = vmatprep.subr.mxu0 0.0
        %865 = vmatpush1.msra.mxu0 %v853
        %866 = vmatprep.subr.mxu0 0.0
        %867 = vmatpush1.msra.mxu0 %v854
        %868 = vmatprep.subr.mxu0 0.0
        %869 = vmatpush1.msra.mxu0 %v855
        %870 = vmatprep.subr.mxu0 0.0
        %871 = vmatpush1.msra.mxu0 %v856
        %872 = vmatprep.subr.mxu0 0.0
        %873 = vmatpush1.msra.mxu0 0.0
        %874 = vmatprep.subr.mxu0 0.0
        %875 = vmatpush1.msra.mxu0 0.0
        %876 = vmatprep.subr.mxu0 0.0
        %877 = vmatpush1.msra.mxu0 0.0
        %878 = vmatprep.subr.mxu0 0.0
        %879 = vmatpush1.msra.mxu0 0.0
        %880 = vmatprep.subr.mxu0 0.0
        %881 = vmatpush1.msra.mxu0 0.0
        %882 = vmatprep.subr.mxu0 0.0
        %883 = vmatpush1.msra.mxu0 0.0
        %884 = vmatprep.subr.mxu0 0.0
        %885 = vmatpush1.msra.mxu0 0.0
        %886 = vmatprep.subr.mxu0 0.0
        %887 = vmatpush1.msra.mxu0 0.0
        %888 = vmatprep.subr.mxu0 0.0
        %889 = vmatpush1.msra.mxu0 0.0
        %890 = vmatprep.subr.mxu0 0.0
        %891 = vmatpush1.msra.mxu0 0.0
        %892 = vmatprep.subr.mxu0 0.0
        %893 = vmatpush1.msra.mxu0 0.0
        %894 = vmatprep.subr.mxu0 0.0
        %895 = vmatpush1.msra.mxu0 0.0
        %896 = vmatprep.subr.mxu0 0.0
        %897 = vmatpush1.msra.mxu0 0.0
        %898 = vmatprep.subr.mxu0 0.0
        %899 = vmatpush1.msra.mxu0 0.0
        %900 = vmatprep.subr.mxu0 0.0
        %901 = vmatpush1.msra.mxu0 0.0
        %902 = vmatprep.subr.mxu0 0.0
        %903 = vmatpush1.msra.mxu0 0.0
        %904 = vmatprep.subr.mxu0 0.0
        %905 = vmatpush1.msra.mxu0 0.0
        %906 = vmatprep.subr.mxu0 0.0
        %907 = vmatpush1.msra.mxu0 0.0
        %908 = vmatprep.subr.mxu0 0.0
        %909 = vmatpush1.msra.mxu0 0.0
        %910 = vmatprep.subr.mxu0 0.0
        %911 = vmatpush1.msra.mxu0 0.0
        %912 = vmatprep.subr.mxu0 0.0
        %913 = vmatpush1.msra.mxu0 0.0
        %914 = vmatprep.subr.mxu0 0.0
        %915 = vmatpush1.msra.mxu0 0.0
        %916 = vmatprep.subr.mxu0 0.0
        %917 = vmatpush1.msra.mxu0 0.0
        %918 = vmatprep.subr.mxu0 0.0
        %919 = vmatpush1.msra.mxu0 0.0
        %920 = vmatprep.subr.mxu0 0.0
        %921 = vmatpush1.msra.mxu0 0.0
        %922 = vmatprep.subr.mxu0 0.0
        %923 = vmatpush1.msra.mxu0 0.0
        %924 = vmatprep.subr.mxu0 0.0
        %925 = vmatpush1.msra.mxu0 0.0
        %926 = vmatprep.subr.mxu0 0.0
        %927 = vmatpush1.msra.mxu0 0.0
        %928 = vmatprep.mubr.f32.mxu0 0.0
        %929 = vmatmul.mubr.f32.gmra.mrb[0].mxu0 %v781
        %v930 = vpop.f32.mrb[0].mxu0
        %v931 = vadd.f32 %v862, %v930
        %v932 = vpop.f32.mrb[0].mxu0
        %933 = vdwg.mxu0
        %v934 = vld [vmem:[%s660] sm:$0xff]
        %v935 = vld [vmem:[%s660 + $0x8] sm:$0xff]
        %v936 = vld [vmem:[%s660 + $0x10] sm:$0xff]
        %v937 = vld [vmem:[%s660 + $0x18] sm:$0xff]
        %v938 = vld [vmem:[%s668] sm:$0x1]
        %v940 = vlaneseq
        %v941 = vshrl.u32 %v940, 7
        %v942 = vsub.s32 0, %v941
        %v943 = vrot.slane %v938, %v942
        %945 = vmatprep.subr.mxu0 0.0
        %946 = vmatpush1.msra.mxu0 %v934
        %947 = vmatprep.subr.mxu0 0.0
        %948 = vmatpush1.msra.mxu0 %v935
        %949 = vmatprep.subr.mxu0 0.0
        %950 = vmatpush1.msra.mxu0 %v936
        %951 = vmatprep.subr.mxu0 0.0
        %952 = vmatpush1.msra.mxu0 %v937
        %953 = vmatprep.subr.mxu0 0.0
        %954 = vmatpush1.msra.mxu0 0.0
        %955 = vmatprep.subr.mxu0 0.0
        %956 = vmatpush1.msra.mxu0 0.0
        %957 = vmatprep.subr.mxu0 0.0
        %958 = vmatpush1.msra.mxu0 0.0
        %959 = vmatprep.subr.mxu0 0.0
        %960 = vmatpush1.msra.mxu0 0.0
        %961 = vmatprep.subr.mxu0 0.0
        %962 = vmatpush1.msra.mxu0 0.0
        %963 = vmatprep.subr.mxu0 0.0
        %964 = vmatpush1.msra.mxu0 0.0
        %965 = vmatprep.subr.mxu0 0.0
        %966 = vmatpush1.msra.mxu0 0.0
        %967 = vmatprep.subr.mxu0 0.0
        %968 = vmatpush1.msra.mxu0 0.0
        %969 = vmatprep.subr.mxu0 0.0
        %970 = vmatpush1.msra.mxu0 0.0
        %971 = vmatprep.subr.mxu0 0.0
        %972 = vmatpush1.msra.mxu0 0.0
        %973 = vmatprep.subr.mxu0 0.0
        %974 = vmatpush1.msra.mxu0 0.0
        %975 = vmatprep.subr.mxu0 0.0
        %976 = vmatpush1.msra.mxu0 0.0
        %977 = vmatprep.subr.mxu0 0.0
        %978 = vmatpush1.msra.mxu0 0.0
        %979 = vmatprep.subr.mxu0 0.0
        %980 = vmatpush1.msra.mxu0 0.0
        %981 = vmatprep.subr.mxu0 0.0
        %982 = vmatpush1.msra.mxu0 0.0
        %983 = vmatprep.subr.mxu0 0.0
        %984 = vmatpush1.msra.mxu0 0.0
        %985 = vmatprep.subr.mxu0 0.0
        %986 = vmatpush1.msra.mxu0 0.0
        %987 = vmatprep.subr.mxu0 0.0
        %988 = vmatpush1.msra.mxu0 0.0
        %989 = vmatprep.subr.mxu0 0.0
        %990 = vmatpush1.msra.mxu0 0.0
        %991 = vmatprep.subr.mxu0 0.0
        %992 = vmatpush1.msra.mxu0 0.0
        %993 = vmatprep.subr.mxu0 0.0
        %994 = vmatpush1.msra.mxu0 0.0
        %995 = vmatprep.subr.mxu0 0.0
        %996 = vmatpush1.msra.mxu0 0.0
        %997 = vmatprep.subr.mxu0 0.0
        %998 = vmatpush1.msra.mxu0 0.0
        %999 = vmatprep.subr.mxu0 0.0
        %1000 = vmatpush1.msra.mxu0 0.0
        %1001 = vmatprep.subr.mxu0 0.0
        %1002 = vmatpush1.msra.mxu0 0.0
        %1003 = vmatprep.subr.mxu0 0.0
        %1004 = vmatpush1.msra.mxu0 0.0
        %1005 = vmatprep.subr.mxu0 0.0
        %1006 = vmatpush1.msra.mxu0 0.0
        %1007 = vmatprep.subr.mxu0 0.0
        %1008 = vmatpush1.msra.mxu0 0.0
        %1009 = vmatprep.mubr.f32.mxu0 0.0
        %1010 = vmatmul.mubr.f32.gmra.mrb[0].mxu0 %v781
        %v1011 = vpop.f32.mrb[0].mxu0
        %v1012 = vadd.f32 %v943, %v1011
        %v1013 = vpop.f32.mrb[0].mxu0
        %1014 = vdwg.mxu0
        %v1015 = vld [vmem:[%s617] sm:$0xff]
        %vm1016 = vcmask 64512
        %v1018 = vsel %vm1016, %v850, 0
        %v1021 = vsel %vm1016, %v931, 0
        %1023 = vmatprep.subr.mxu0 0.0
        %1024 = vmatpush1.xpose.msra.mxu0 %v1021
        %1025 = vmatprep.subr.mxu0 0.0
        %1026 = vmatpush1.xpose.msra.mxu0 0.0
        %1027 = vmatprep.subr.mxu0 0.0
        %1028 = vmatpush1.xpose.msra.mxu0 0.0
        %1029 = vmatprep.subr.mxu0 0.0
        %1030 = vmatpush1.xpose.msra.mxu0 0.0
        %1031 = vmatprep.subr.mxu0 0.0
        %1032 = vmatpush1.xpose.msra.mxu0 0.0
        %1033 = vmatprep.subr.mxu0 0.0
        %1034 = vmatpush1.xpose.msra.mxu0 0.0
        %1035 = vmatprep.subr.mxu0 0.0
        %1036 = vmatpush1.xpose.msra.mxu0 0.0
        %1037 = vmatprep.subr.mxu0 0.0
        %1038 = vmatpush1.xpose.msra.mxu0 0.0
        %1039 = vmatprep.subr.mxu0 0.0
        %1040 = vmatpush1.xpose.msra.mxu0 0.0
        %1041 = vmatprep.subr.mxu0 0.0
        %1042 = vmatpush1.xpose.msra.mxu0 0.0
        %1043 = vmatprep.subr.mxu0 0.0
        %1044 = vmatpush1.xpose.msra.mxu0 0.0
        %1045 = vmatprep.subr.mxu0 0.0
        %1046 = vmatpush1.xpose.msra.mxu0 0.0
        %1047 = vmatprep.subr.mxu0 0.0
        %1048 = vmatpush1.xpose.msra.mxu0 0.0
        %1049 = vmatprep.subr.mxu0 0.0
        %1050 = vmatpush1.xpose.msra.mxu0 0.0
        %1051 = vmatprep.subr.mxu0 0.0
        %1052 = vmatpush1.xpose.msra.mxu0 0.0
        %1053 = vmatprep.subr.mxu0 0.0
        %1054 = vmatpush1.xpose.msra.mxu0 0.0
        %1055 = vmatprep.subr.mxu0 0.0
        %1056 = vmatpush1.xpose.msra.mxu0 0.0
        %1057 = vmatprep.subr.mxu0 0.0
        %1058 = vmatpush1.xpose.msra.mxu0 0.0
        %1059 = vmatprep.subr.mxu0 0.0
        %1060 = vmatpush1.xpose.msra.mxu0 0.0
        %1061 = vmatprep.subr.mxu0 0.0
        %1062 = vmatpush1.xpose.msra.mxu0 0.0
        %1063 = vmatprep.subr.mxu0 0.0
        %1064 = vmatpush1.xpose.msra.mxu0 0.0
        %1065 = vmatprep.subr.mxu0 0.0
        %1066 = vmatpush1.xpose.msra.mxu0 0.0
        %1067 = vmatprep.subr.mxu0 0.0
        %1068 = vmatpush1.xpose.msra.mxu0 0.0
        %1069 = vmatprep.subr.mxu0 0.0
        %1070 = vmatpush1.xpose.msra.mxu0 0.0
        %1071 = vmatprep.subr.mxu0 0.0
        %1072 = vmatpush1.xpose.msra.mxu0 0.0
        %1073 = vmatprep.subr.mxu0 0.0
        %1074 = vmatpush1.xpose.msra.mxu0 0.0
        %1075 = vmatprep.subr.mxu0 0.0
        %1076 = vmatpush1.xpose.msra.mxu0 0.0
        %1077 = vmatprep.subr.mxu0 0.0
        %1078 = vmatpush1.xpose.msra.mxu0 0.0
        %1079 = vmatprep.subr.mxu0 0.0
        %1080 = vmatpush1.xpose.msra.mxu0 0.0
        %1081 = vmatprep.subr.mxu0 0.0
        %1082 = vmatpush1.xpose.msra.mxu0 0.0
        %1083 = vmatprep.subr.mxu0 0.0
        %1084 = vmatpush1.xpose.msra.mxu0 0.0
        %1085 = vmatprep.subr.mxu0 0.0
        %1086 = vmatpush1.xpose.msra.mxu0 0.0
        %1087 = vmatprep.mubr.f32.mxu0 0.0
        %1088 = vmatmul.mubr.f32.gmra.mrb[0].mxu0 %v1018
        %v1089 = vpop.f32.mrb[0].mxu0
        %v1090 = vadd.f32 %v1015, %v1089
        %v1091 = vpop.f32.mrb[0].mxu0
        %1092 = vdwg.mxu0
        %v1093 = vsel %vm1016, %v1090, -inf
        %1094 = vmax.xlane.f32.xlu0 %v1093
        %v1095 = vpop.xlane.xlu0 %1094
        %v1096 = vsub.f32 %v1090, %v1095
        %v1097 = vmul.f32 %v1096, 1.442695
        %v1098 = vpow.pop %v1097
        %v1099 = vsel %vm1016, %v1098, 0.0
        %1100 = vadd.xlane.f32.xlu0 %v1099
        %v1101 = vpop.xlane.xlu0 %1100
        %v1102 = vrcp.pop %v1101
        %v1103 = vmul.f32 %v1098, %v1102
        %v1105 = vsel %vm1016, %v1103, 0
        %1107 = vmatprep.subr.mxu0 0.0
        %1108 = vmatpush1.msra.mxu0 %v1012
        %1109 = vmatprep.subr.mxu0 0.0
        %1110 = vmatpush1.msra.mxu0 0.0
        %1111 = vmatprep.subr.mxu0 0.0
        %1112 = vmatpush1.msra.mxu0 0.0
        %1113 = vmatprep.subr.mxu0 0.0
        %1114 = vmatpush1.msra.mxu0 0.0
        %1115 = vmatprep.subr.mxu0 0.0
        %1116 = vmatpush1.msra.mxu0 0.0
        %1117 = vmatprep.subr.mxu0 0.0
        %1118 = vmatpush1.msra.mxu0 0.0
        %1119 = vmatprep.subr.mxu0 0.0
        %1120 = vmatpush1.msra.mxu0 0.0
        %1121 = vmatprep.subr.mxu0 0.0
        %1122 = vmatpush1.msra.mxu0 0.0
        %1123 = vmatprep.subr.mxu0 0.0
        %1124 = vmatpush1.msra.mxu0 0.0
        %1125 = vmatprep.subr.mxu0 0.0
        %1126 = vmatpush1.msra.mxu0 0.0
        %1127 = vmatprep.subr.mxu0 0.0
        %1128 = vmatpush1.msra.mxu0 0.0
        %1129 = vmatprep.subr.mxu0 0.0
        %1130 = vmatpush1.msra.mxu0 0.0
        %1131 = vmatprep.subr.mxu0 0.0
        %1132 = vmatpush1.msra.mxu0 0.0
        %1133 = vmatprep.subr.mxu0 0.0
        %1134 = vmatpush1.msra.mxu0 0.0
        %1135 = vmatprep.subr.mxu0 0.0
        %1136 = vmatpush1.msra.mxu0 0.0
        %1137 = vmatprep.subr.mxu0 0.0
        %1138 = vmatpush1.msra.mxu0 0.0
        %1139 = vmatprep.subr.mxu0 0.0
        %1140 = vmatpush1.msra.mxu0 0.0
        %1141 = vmatprep.subr.mxu0 0.0
        %1142 = vmatpush1.msra.mxu0 0.0
        %1143 = vmatprep.subr.mxu0 0.0
        %1144 = vmatpush1.msra.mxu0 0.0
        %1145 = vmatprep.subr.mxu0 0.0
        %1146 = vmatpush1.msra.mxu0 0.0
        %1147 = vmatprep.subr.mxu0 0.0
        %1148 = vmatpush1.msra.mxu0 0.0
        %1149 = vmatprep.subr.mxu0 0.0
        %1150 = vmatpush1.msra.mxu0 0.0
        %1151 = vmatprep.subr.mxu0 0.0
        %1152 = vmatpush1.msra.mxu0 0.0
        %1153 = vmatprep.subr.mxu0 0.0
        %1154 = vmatpush1.msra.mxu0 0.0
        %1155 = vmatprep.subr.mxu0 0.0
        %1156 = vmatpush1.msra.mxu0 0.0
        %1157 = vmatprep.subr.mxu0 0.0
        %1158 = vmatpush1.msra.mxu0 0.0
        %1159 = vmatprep.subr.mxu0 0.0
        %1160 = vmatpush1.msra.mxu0 0.0
        %1161 = vmatprep.subr.mxu0 0.0
        %1162 = vmatpush1.msra.mxu0 0.0
        %1163 = vmatprep.subr.mxu0 0.0
        %1164 = vmatpush1.msra.mxu0 0.0
        %1165 = vmatprep.subr.mxu0 0.0
        %1166 = vmatpush1.msra.mxu0 0.0
        %1167 = vmatprep.subr.mxu0 0.0
        %1168 = vmatpush1.msra.mxu0 0.0
        %1169 = vmatprep.subr.mxu0 0.0
        %1170 = vmatpush1.msra.mxu0 0.0
        %1171 = vmatprep.mubr.f32.mxu0 0.0
        %1172 = vmatmul.mubr.f32.gmra.mrb[0].mxu0 %v1105
        %v1173 = vpop.f32.mrb[0].mxu0
        %v1174 = vadd.f32 0.0, %v1173
        %v1175 = vpop.f32.mrb[0].mxu0
        %1176 = vdwg.mxu0
        %v1177 = vld [vmem:[%s677] sm:$0xff]
        %v1179 = vsel %vm1016, %v1174, 0
        %1181 = vmatprep.subr.mxu0 0.0
        %1182 = vmatpush1.msra.mxu0 %v1177
        %1183 = vmatprep.subr.mxu0 0.0
        %1184 = vmatpush1.msra.mxu0 0.0
        %1185 = vmatprep.subr.mxu0 0.0
        %1186 = vmatpush1.msra.mxu0 0.0
        %1187 = vmatprep.subr.mxu0 0.0
        %1188 = vmatpush1.msra.mxu0 0.0
        %1189 = vmatprep.subr.mxu0 0.0
        %1190 = vmatpush1.msra.mxu0 0.0
        %1191 = vmatprep.subr.mxu0 0.0
        %1192 = vmatpush1.msra.mxu0 0.0
        %1193 = vmatprep.subr.mxu0 0.0
        %1194 = vmatpush1.msra.mxu0 0.0
        %1195 = vmatprep.subr.mxu0 0.0
        %1196 = vmatpush1.msra.mxu0 0.0
        %1197 = vmatprep.subr.mxu0 0.0
        %1198 = vmatpush1.msra.mxu0 0.0
        %1199 = vmatprep.subr.mxu0 0.0
        %1200 = vmatpush1.msra.mxu0 0.0
        %1201 = vmatprep.subr.mxu0 0.0
        %1202 = vmatpush1.msra.mxu0 0.0
        %1203 = vmatprep.subr.mxu0 0.0
        %1204 = vmatpush1.msra.mxu0 0.0
        %1205 = vmatprep.subr.mxu0 0.0
        %1206 = vmatpush1.msra.mxu0 0.0
        %1207 = vmatprep.subr.mxu0 0.0
        %1208 = vmatpush1.msra.mxu0 0.0
        %1209 = vmatprep.subr.mxu0 0.0
        %1210 = vmatpush1.msra.mxu0 0.0
        %1211 = vmatprep.subr.mxu0 0.0
        %1212 = vmatpush1.msra.mxu0 0.0
        %1213 = vmatprep.subr.mxu0 0.0
        %1214 = vmatpush1.msra.mxu0 0.0
        %1215 = vmatprep.subr.mxu0 0.0
        %1216 = vmatpush1.msra.mxu0 0.0
        %1217 = vmatprep.subr.mxu0 0.0
        %1218 = vmatpush1.msra.mxu0 0.0
        %1219 = vmatprep.subr.mxu0 0.0
        %1220 = vmatpush1.msra.mxu0 0.0
        %1221 = vmatprep.subr.mxu0 0.0
        %1222 = vmatpush1.msra.mxu0 0.0
        %1223 = vmatprep.subr.mxu0 0.0
        %1224 = vmatpush1.msra.mxu0 0.0
        %1225 = vmatprep.subr.mxu0 0.0
        %1226 = vmatpush1.msra.mxu0 0.0
        %1227 = vmatprep.subr.mxu0 0.0
        %1228 = vmatpush1.msra.mxu0 0.0
        %1229 = vmatprep.subr.mxu0 0.0
        %1230 = vmatpush1.msra.mxu0 0.0
        %1231 = vmatprep.subr.mxu0 0.0
        %1232 = vmatpush1.msra.mxu0 0.0
        %1233 = vmatprep.subr.mxu0 0.0
        %1234 = vmatpush1.msra.mxu0 0.0
        %1235 = vmatprep.subr.mxu0 0.0
        %1236 = vmatpush1.msra.mxu0 0.0
        %1237 = vmatprep.subr.mxu0 0.0
        %1238 = vmatpush1.msra.mxu0 0.0
        %1239 = vmatprep.subr.mxu0 0.0
        %1240 = vmatpush1.msra.mxu0 0.0
        %1241 = vmatprep.subr.mxu0 0.0
        %1242 = vmatpush1.msra.mxu0 0.0
        %1243 = vmatprep.subr.mxu0 0.0
        %1244 = vmatpush1.msra.mxu0 0.0
        %1245 = vmatprep.mubr.f32.mxu0 0.0
        %1246 = vmatmul.mubr.f32.gmra.mrb[0].mxu0 %v1179
        %v1247 = vpop.f32.mrb[0].mxu0
        %v1248 = vadd.f32 0.0, %v1247
        %v1249 = vpop.f32.mrb[0].mxu0
        %1250 = vdwg.mxu0
        %p1251 = scmp.eq.s32.totalorder %s48, 0
        // Predicated region
        $region117: #{tpu_custom_call.1} parent=67 // pred_check
          %p1252 = pneg %p1251
        $region118: #{tpu_custom_call.1} parent=67 // pred_check_branch
          %1254 = sbr.rel (%p1252) target = $region120
        $region119: #{tpu_custom_call.1} parent=67 // pred_region
          %1255 = vst.msk [vmem:[#allocation2] sm:$0xff] %vm779, 0.0
        $region120: #{tpu_custom_call.1} parent=67 // pred_fallthru
          _
        %v1256 = vld [vmem:[#allocation2] sm:$0xff]
        %v1257 = vadd.f32 %v1256, %v1248
        %1258 = vst.msk [vmem:[#allocation2] sm:$0xff] %vm779, %v1257
        %p1259 = scmp.eq.s32.totalorder %s48, 3
        // Predicated region
        $region121: #{tpu_custom_call.1} parent=67 // pred_check
          %p1260 = pneg %p1259
        $region122: #{tpu_custom_call.1} parent=67 // pred_check_branch
          %1262 = sbr.rel (%p1260) target = $region124
        $region123: #{tpu_custom_call.1} parent=67 // pred_region
          %v1263 = vld [vmem:[#allocation2] sm:$0xff]
          %v1264 = vld [vmem:[#allocation18] sm:$0x1]
          %v1266 = vlaneseq
          %v1267 = vshrl.u32 %v1266, 7
          %v1268 = vsub.s32 0, %v1267
          %v1269 = vrot.slane %v1264, %v1268
          %v1271 = vadd.f32 %v1263, %v1269
          %v1272 = vadd.f32 %v1271, %v767
          %v1273 = vld [vmem:[#allocation20] sm:$0x1]
          %v1274 = vld [vmem:[#allocation21] sm:$0x1]
          %v1275 = vsel %vm779, %v1272, 0.0
          %1276 = vadd.xlane.f32.xlu0 %v1275
          %v1277 = vpop.xlane.xlu0 %1276
          %v1278 = vrcp.pop 32.0
          %v1279 = vmul.f32 %v1277, %v1278
          %v1280 = vsub.f32 %v1272, %v1279
          %v1281 = vmul.f32 %v1280, %v1280
          %v1282 = vsel %vm779, %v1281, 0.0
          %1283 = vadd.xlane.f32.xlu0 %v1282
          %v1284 = vpop.xlane.xlu0 %1283
          %v1285 = vmul.f32 %v1284, %v1278
          %v1286 = vadd.f32 %v1285, 1e-05
          %v1287 = vrsqrt.pop %v1286
          %v1288 = vmul.f32 %v1280, %v1287
          %v1290 = vlaneseq
          %v1291 = vshrl.u32 %v1290, 7
          %v1292 = vsub.s32 0, %v1291
          %v1293 = vrot.slane %v1273, %v1292
          %v1295 = vmul.f32 %v1288, %v1293
          %v1297 = vlaneseq
          %v1298 = vshrl.u32 %v1297, 7
          %v1299 = vsub.s32 0, %v1298
          %v1300 = vrot.slane %v1274, %v1299
          %v1302 = vadd.f32 %v1295, %v1300
          %1303 = vst.msk [vmem:[%s766] sm:$0xff] %vm779, %v1302
        $region124: #{tpu_custom_call.1} parent=67 // pred_fallthru
          _
        %s1304 = sand.u32 %s362, 1
        %s1305 = scalar_lea.sflag [#allocation5], %s1304
        %s1306 = sand.u32 %s362, 1
        %s1307 = smul.addr %s1306, 8
        %s1308 = scalar_lea.vmem [#allocation23], %s1307
        // Predicated region
        $region125: #{tpu_custom_call.1} parent=67 // pred_check
          %p1309 = pneg %p372
        $region126: #{tpu_custom_call.1} parent=67 // pred_check_branch
          %1311 = sbr.rel (%p1309) target = $region128
        $region127: #{tpu_custom_call.1} parent=67 // pred_region
          %s1313 = ssub.s32 128, 128
          %1314 = vsyncadd %s1305, %s1313
          %s1315 = smul.addr %s47, 128
          %s1316 = scalar_lea.hbm %s12, %s1315
          %s1318 = sshll.u32 %s1308, 4
          %s1319 = int_to_ptr.vmem [resolvable:$true] %s1318
          %1321 = dma.vmem_to_hbm [thread:$0]  %s1319, 128, %s1316, %s1305
        $region128: #{tpu_custom_call.1} parent=67 // pred_fallthru
          _
      $region68: #{tpu_custom_call.1} parent=5 // pred_fallthru
        _
      %p1322 = scmp.le.s32.totalorder 2, %s38
      // Predicated region
      $region129: #{tpu_custom_call.1} parent=5 // pred_check
        %p1323 = pneg %p1322
      $region130: #{tpu_custom_call.1} parent=5 // pred_check_branch
        %1325 = sbr.rel (%p1323) target = $region132
      $region131: #{tpu_custom_call.1} parent=5 // pred_region
        %s1326 = ssub.s32 %s38, 2
        // Predicated region
        $region133: #{tpu_custom_call.1} parent=131 // pred_check
          %p1327 = pneg %p378
        $region134: #{tpu_custom_call.1} parent=131 // pred_check_branch
          %1329 = sbr.rel (%p1327) target = $region136
        $region135: #{tpu_custom_call.1} parent=131 // pred_region
          %s1330 = sand.u32 %s363, 1
          %s1331 = scalar_lea.sflag [#allocation5], %s1330
          %s1332 = sand.u32 %s363, 1
          %s1333 = smul.addr %s1332, 8
          %s1334 = scalar_lea.vmem [#allocation23], %s1333
          %1335 = dma.done %s1331, 128
        $region136: #{tpu_custom_call.1} parent=131 // pred_fallthru
          _
      $region132: #{tpu_custom_call.1} parent=5 // pred_fallthru
        _
    $region6: #{tpu_custom_call.1} parent=1 // loop_footer
      %s42 = sadd.s32 1, %s38
    $region7: #{tpu_custom_call.1} parent=1 // loop_footer_branch
      %37 = sbr.rel target = $region3
    $region8: #{tpu_custom_call.1} parent=1 // loop_exit
      _
    %1336 = vsyncpa [#allocation4], 1
    %s1337 = scalar_lea.sflag [#allocation4], 1
    %1338 = vsyncpa %s1337, 1
    %1339 = vsyncpa [#allocation7], 1
    %s1340 = scalar_lea.sflag [#allocation7], 1
    %1341 = vsyncpa %s1340, 1
    %1342 = vsyncpa [#allocation10], 1
    %s1343 = scalar_lea.sflag [#allocation10], 1
    %1344 = vsyncpa %s1343, 1
    %1345 = vsyncpa [#allocation13], 1
    %s1346 = scalar_lea.sflag [#allocation13], 1
    %1347 = vsyncpa %s1346, 1
    %1348 = vsyncpa [#allocation16], 1
    %s1349 = scalar_lea.sflag [#allocation16], 1
    %1350 = vsyncpa %s1349, 1
    %1351 = vsyncpa [#allocation19], 1
    %1352 = vsyncpa [#allocation22], 1
    %1353 = vsyncpa [#allocation5], 1
    %s1354 = scalar_lea.sflag [#allocation5], 1
    %1355 = vsyncpa %s1354, 1

</llo_original>
